<compile_context>
chip_gen: v6e
topology: v6e:2x2x1
jax: 0.10.0
libtpu: 0.0.40
codegen_flags: <defaults>
</compile_context>

<pallas_src>
import functools

import jax
import jax.numpy as jnp
from jax.experimental import pallas as pl
from jax.experimental.pallas import tpu as pltpu


def _transformer_layer_kernel(x_ref, wqkv_ref, wout_ref, bout_ref,
                              out_ref, attn_ref, *, heads, dim_head, scale):
    """One grid step == one batch element.

    x_ref:    (1, N, D)        f32  VMEM
    wqkv_ref: (3*H, dh, D)     bf16 VMEM  (row g = block*H + h; block 0/1/2 = q/k/v)
    wout_ref: (H, dh, D)       bf16 VMEM
    bout_ref: (1, D)           f32  VMEM
    out_ref:  (1, N, D)        f32  VMEM
    attn_ref: (1, H, N, N)     f32  VMEM
    """
    H, dh = heads, dim_head
    x = x_ref[0]                                        # (N, D) f32 (kept for residual)
    n, d = x.shape

    # ---- QKV projection: one head-batched matmul (bf16 in, f32 acc) ----
    xb = x.astype(jnp.bfloat16)
    xg = jnp.broadcast_to(xb, (3 * H, n, d))            # (3H, N, D) bf16
    qkv = jnp.einsum('gnd,gfd->gnf', xg, wqkv_ref[...],
                     preferred_element_type=jnp.float32)  # (3H, N, dh) f32

    q = (qkv[0:H] * scale).astype(jnp.bfloat16)         # (H, N, dh) — scale folded into q
    k = qkv[H:2 * H].astype(jnp.bfloat16)               # (H, N, dh)
    v = qkv[2 * H:3 * H].astype(jnp.bfloat16)           # (H, N, dh)

    # ---- scaled dot-product attention, heads batched on the leading dim ----
    # Contract on the last dim of both operands -> no explicit transpose.
    dots = jnp.einsum('hqd,hkd->hqk', q, k,
                      preferred_element_type=jnp.float32)  # (H, N, N) f32

    # Numerically-stable softmax in f32.
    dots = dots - jnp.max(dots, axis=-1, keepdims=True)
    e = jnp.exp(dots)
    denom = jnp.sum(e, axis=-1, keepdims=True)
    attn = e * pl.reciprocal(denom, approx=True)        # EUP vrcp slot
    attn_ref[0] = attn                                  # lane-dense (last dim = N)

    # ---- attention-weighted values, head-batched ----
    ctx = jnp.einsum('hqk,hkd->hqd', attn.astype(jnp.bfloat16), v,
                     preferred_element_type=jnp.float32)  # (H, N, dh) f32

    # ---- output projection: per-head (dh, D) weight, reduce over heads ----
    # Equivalent to concat(heads) @ Wout^T but with lane-dense (D-wide) tiles
    # and no (H,N,dh)->(N,H*dh) relayout.
    proj_h = jnp.einsum('hnc,hcd->hnd', ctx.astype(jnp.bfloat16), wout_ref[...],
                        preferred_element_type=jnp.float32)  # (H, N, D) f32
    proj = jnp.sum(proj_h, axis=0) + bout_ref[...]      # (N, D) f32

    # Residual add (Dropout is identity at inference).
    out_ref[0] = proj + x


def transformer_layer(x, w_qkv, w_out, b_out, *, heads):
    """x: (B, N, D) float32.

    Weights in PyTorch nn.Linear layout:
      w_qkv: (3*inner, D)   (to_qkv.weight, bias=False)
      w_out: (D, inner)     (to_out Linear weight)
      b_out: (D,)           (to_out Linear bias)
    Returns (out (B, N, D) f32, attn (B, H, N, N) f32).
    """
    B, N, D = x.shape
    inner = w_qkv.shape[0] // 3
    dh = inner // heads
    scale = dh ** (-0.5)

    # Head-major weight layouts (done once in XLA, outside the kernel).
    #   wqkv_h[g] = W for (block, head) with g = block*heads + head,  shape (dh, D)
    #   wout_h[h] = Wout^T rows for head h,                           shape (dh, D)
    wqkv_h = w_qkv.reshape(3 * heads, dh, D).astype(jnp.bfloat16)
    wout_h = jnp.transpose(w_out, (1, 0)).reshape(heads, dh, D).astype(jnp.bfloat16)
    bout2d = b_out.reshape(1, D).astype(jnp.float32)

    kernel = functools.partial(
        _transformer_layer_kernel, heads=heads, dim_head=dh, scale=scale)

    out_shape = (
        jax.ShapeDtypeStruct((B, N, D), jnp.float32),
        jax.ShapeDtypeStruct((B, heads, N, N), jnp.float32),
    )

    # Advisory cost estimate so XLA can overlap this call with its neighbours.
    flops = 2 * B * N * (D * 3 * inner + 2 * heads * N * dh + inner * D)
    transcendentals = B * heads * N * N
    bytes_accessed = (B * N * D * 4                       # x in
                      + 3 * heads * dh * D * 2            # Wqkv (bf16)
                      + heads * dh * D * 2                # Wout (bf16)
                      + D * 4                             # bias
                      + B * N * D * 4                     # out
                      + B * heads * N * N * 4)            # attn

    grid_spec = pltpu.PrefetchScalarGridSpec(
        num_scalar_prefetch=0,
        grid=(B,),
        in_specs=[
            pl.BlockSpec((1, N, D), lambda b: (b, 0, 0)),            # x per-batch
            # Constant index_map -> weights DMA'd once per core, not per step.
            pl.BlockSpec((3 * heads, dh, D), lambda b: (0, 0, 0)),   # Wqkv heads
            pl.BlockSpec((heads, dh, D), lambda b: (0, 0, 0)),       # Wout heads
            pl.BlockSpec((1, D), lambda b: (0, 0)),                  # bias
        ],
        out_specs=[
            pl.BlockSpec((1, N, D), lambda b: (b, 0, 0)),
            pl.BlockSpec((1, heads, N, N), lambda b: (b, 0, 0, 0)),
        ],
    )

    return pl.pallas_call(
        kernel,
        grid_spec=grid_spec,
        out_shape=out_shape,
        compiler_params=pltpu.CompilerParams(
            dimension_semantics=("parallel",)),
        cost_estimate=pl.CostEstimate(flops=flops,
                                      transcendentals=transcendentals,
                                      bytes_accessed=bytes_accessed),
    )(x, wqkv_h, wout_h, bout2d)


def _reference(x, w_qkv, w_out, b_out, heads):
    """Pure-JAX f32 reference mirroring the PyTorch forward."""
    B, N, D = x.shape
    inner = w_qkv.shape[0] // 3
    dh = inner // heads
    qkv = x @ w_qkv.T                                                # (B, N, 3I)
    q, k, v = jnp.split(qkv, 3, axis=-1)

    def to_heads(t):
        return t.reshape(B, N, heads, dh).transpose(0, 2, 1, 3)      # (B, H, N, dh)

    q, k, v = map(to_heads, (q, k, v))
    dots = jnp.einsum('bhnd,bhmd->bhnm', q, k) * (dh ** -0.5)
    attn = jax.nn.softmax(dots, axis=-1)
    out = jnp.einsum('bhnm,bhmd->bhnd', attn, v)
    out = out.transpose(0, 2, 1, 3).reshape(B, N, inner)
    out = out @ w_out.T + b_out
    return out + x, attn


if __name__ == "__main__":
    # Small shapes consistent with the module: dim divisible by heads.
    B, N, D, HEADS = 2, 8, 32, 4
    DH = D // HEADS
    INNER = DH * HEADS          # inner_dim == dim (dim_head = dim // heads)

    key = jax.random.PRNGKey(0)
    kx, kqkv, kw, kb = jax.random.split(key, 4)

    x = jax.random.normal(kx, (B, N, D), dtype=jnp.float32)
    # PyTorch nn.Linear weight layout (out_features, in_features).
    w_qkv = jax.random.normal(kqkv, (3 * INNER, D), dtype=jnp.float32) * 0.05
    w_out = jax.random.normal(kw, (D, INNER), dtype=jnp.float32) * 0.05
    b_out = jax.random.normal(kb, (D,), dtype=jnp.float32) * 0.05
    # TODO(synk): dropout layers (p=0.1) are identity in inference; training-mode
    # dropout RNG is not implemented.

    out, attn = transformer_layer(x, w_qkv, w_out, b_out, heads=HEADS)
    out = jax.block_until_ready(out)
    attn = jax.block_until_ready(attn)

    ref_out, ref_attn = _reference(x, w_qkv, w_out, b_out, HEADS)
    assert out.shape == (B, N, D) and attn.shape == (B, HEADS, N, N)
    # Tolerances account for bf16 matmul inputs + approx reciprocal in softmax.
    assert jnp.allclose(out, ref_out, atol=2e-2, rtol=2e-2)
    assert jnp.allclose(attn, ref_attn, atol=1e-2, rtol=1e-2)

    print("KERNEL_OK")
</pallas_src>

<mosaic_0001>
module attributes {stable_mosaic.version = 11 : i64} {
  func.func @_transformer_layer_kernel(%arg0: i32, %arg1: memref<1x8x32xf32, #tpu.memory_space<vmem>>, %arg2: memref<12x8x32xbf16, #tpu.memory_space<vmem>>, %arg3: memref<4x8x32xbf16, #tpu.memory_space<vmem>>, %arg4: memref<1x32xf32, #tpu.memory_space<vmem>>, %arg5: memref<1x8x32xf32, #tpu.memory_space<vmem>>, %arg6: memref<1x4x8x8xf32, #tpu.memory_space<vmem>>) attributes {dimension_semantics = [#tpu.dimension_semantics<parallel>], iteration_bounds = array<i64: 2>, scalar_prefetch = 0 : i64, scratch_operands = 0 : i64, tpu.core_type = #tpu.core_type<tc>, window_params = [{transform_indices = @transform_0, window_bounds = array<i64: 1, 8, 32>}, {pipeline_mode = #tpu.pipeline_mode<synchronous>, transform_indices = @transform_1, window_bounds = array<i64: 12, 8, 32>}, {pipeline_mode = #tpu.pipeline_mode<synchronous>, transform_indices = @transform_2, window_bounds = array<i64: 4, 8, 32>}, {pipeline_mode = #tpu.pipeline_mode<synchronous>, transform_indices = @transform_3, window_bounds = array<i64: 1, 32>}, {transform_indices = @transform_4, window_bounds = array<i64: 1, 8, 32>}, {transform_indices = @transform_5, window_bounds = array<i64: 1, 4, 8, 8>}]} {
    %c0 = arith.constant 0 : index
    %c0_0 = arith.constant 0 : index
    %c0_1 = arith.constant 0 : index
    %0 = vector.load %arg1[%c0, %c0_0, %c0_1] : memref<1x8x32xf32, #tpu.memory_space<vmem>>, vector<1x8x32xf32>
    %1 = vector.shape_cast %0 : vector<1x8x32xf32> to vector<8x32xf32>
    %2 = arith.truncf %1 : vector<8x32xf32> to vector<8x32xbf16>
    %3 = vector.shape_cast %2 : vector<8x32xbf16> to vector<1x8x32xbf16>
    %4 = vector.broadcast %3 : vector<1x8x32xbf16> to vector<12x8x32xbf16>
    %c0_2 = arith.constant 0 : index
    %c0_3 = arith.constant 0 : index
    %c0_4 = arith.constant 0 : index
    %5 = vector.load %arg2[%c0_2, %c0_3, %c0_4] : memref<12x8x32xbf16, #tpu.memory_space<vmem>>, vector<12x8x32xbf16>
    "tpu.trace_start"() <{level = 10 : i32, message = "gnd,gfd->gnf"}> : () -> ()
    %cst = arith.constant dense<0.000000e+00> : vector<12x8x8xf32>
    %6 = tpu.matmul %4, %5, %cst {dimension_numbers = #tpu.dot_dimension_numbers<[2], [2], [1], [1], [0, 0, 0, 1, 1, 1], [0], [0]>} : vector<12x8x32xbf16>, vector<12x8x32xbf16>, vector<12x8x8xf32> -> vector<12x8x8xf32>
    "tpu.trace_stop"() : () -> ()
    %7 = vector.extract_strided_slice %6 {offsets = [0, 0, 0], sizes = [4, 8, 8], strides = [1, 1, 1]} : vector<12x8x8xf32> to vector<4x8x8xf32>
    %cst_5 = arith.constant 0.353553385 : f32
    %8 = vector.broadcast %cst_5 : f32 to vector<4x8x8xf32>
    %9 = arith.mulf %7, %8 : vector<4x8x8xf32>
    %10 = arith.truncf %9 : vector<4x8x8xf32> to vector<4x8x8xbf16>
    %11 = vector.extract_strided_slice %6 {offsets = [4, 0, 0], sizes = [4, 8, 8], strides = [1, 1, 1]} : vector<12x8x8xf32> to vector<4x8x8xf32>
    %12 = arith.truncf %11 : vector<4x8x8xf32> to vector<4x8x8xbf16>
    %13 = vector.extract_strided_slice %6 {offsets = [8, 0, 0], sizes = [4, 8, 8], strides = [1, 1, 1]} : vector<12x8x8xf32> to vector<4x8x8xf32>
    %14 = arith.truncf %13 : vector<4x8x8xf32> to vector<4x8x8xbf16>
    "tpu.trace_start"() <{level = 10 : i32, message = "hqd,hkd->hqk"}> : () -> ()
    %cst_6 = arith.constant dense<0.000000e+00> : vector<4x8x8xf32>
    %15 = tpu.matmul %10, %12, %cst_6 {dimension_numbers = #tpu.dot_dimension_numbers<[2], [2], [1], [1], [0, 0, 0, 1, 1, 1], [0], [0]>} : vector<4x8x8xbf16>, vector<4x8x8xbf16>, vector<4x8x8xf32> -> vector<4x8x8xf32>
    "tpu.trace_stop"() : () -> ()
    %cst_7 = arith.constant dense<0xFF800000> : vector<4x8xf32>
    %16 = vector.multi_reduction <maximumf>, %15, %cst_7 [2] : vector<4x8x8xf32> to vector<4x8xf32>
    %17 = vector.shape_cast %16 : vector<4x8xf32> to vector<4x8x1xf32>
    %18 = vector.broadcast %17 : vector<4x8x1xf32> to vector<4x8x8xf32>
    %19 = arith.subf %15, %18 : vector<4x8x8xf32>
    %20 = math.exp %19 : vector<4x8x8xf32>
    %cst_8 = arith.constant dense<0.000000e+00> : vector<4x8xf32>
    %21 = vector.multi_reduction <add>, %20, %cst_8 [2] : vector<4x8x8xf32> to vector<4x8xf32>
    %22 = vector.shape_cast %21 : vector<4x8xf32> to vector<4x8x1xf32>
    %23 = tpu.reciprocal %22 {approx = true} : vector<4x8x1xf32> -> vector<4x8x1xf32>
    %24 = vector.broadcast %23 : vector<4x8x1xf32> to vector<4x8x8xf32>
    %25 = arith.mulf %20, %24 : vector<4x8x8xf32>
    %c0_9 = arith.constant 0 : index
    %c0_10 = arith.constant 0 : index
    %c0_11 = arith.constant 0 : index
    %c0_12 = arith.constant 0 : index
    %26 = vector.load %arg6[%c0_9, %c0_10, %c0_11, %c0_12] : memref<1x4x8x8xf32, #tpu.memory_space<vmem>>, vector<1x4x8x8xf32>
    %27 = vector.shape_cast %26 : vector<1x4x8x8xf32> to vector<4x8x8xf32>
    %28 = vector.shape_cast %25 : vector<4x8x8xf32> to vector<1x4x8x8xf32>
    tpu.vector_store %arg6[%c0_9, %c0_10, %c0_11, %c0_12], %28 {strides = array<i32>} : memref<1x4x8x8xf32, #tpu.memory_space<vmem>>, vector<1x4x8x8xf32>,
    %29 = arith.truncf %25 : vector<4x8x8xf32> to vector<4x8x8xbf16>
    "tpu.trace_start"() <{level = 10 : i32, message = "hqk,hkd->hqd"}> : () -> ()
    %cst_13 = arith.constant dense<0.000000e+00> : vector<4x8x8xf32>
    %30 = tpu.matmul %29, %14, %cst_13 {dimension_numbers = #tpu.dot_dimension_numbers<[2], [1], [1], [2], [0, 0, 0, 1, 1, 2], [0], [0]>} : vector<4x8x8xbf16>, vector<4x8x8xbf16>, vector<4x8x8xf32> -> vector<4x8x8xf32>
    "tpu.trace_stop"() : () -> ()
    %31 = arith.truncf %30 : vector<4x8x8xf32> to vector<4x8x8xbf16>
    %c0_14 = arith.constant 0 : index
    %c0_15 = arith.constant 0 : index
    %c0_16 = arith.constant 0 : index
    %32 = vector.load %arg3[%c0_14, %c0_15, %c0_16] : memref<4x8x32xbf16, #tpu.memory_space<vmem>>, vector<4x8x32xbf16>
    "tpu.trace_start"() <{level = 10 : i32, message = "hnc,hcd->hnd"}> : () -> ()
    %cst_17 = arith.constant dense<0.000000e+00> : vector<4x8x32xf32>
    %33 = tpu.matmul %31, %32, %cst_17 {dimension_numbers = #tpu.dot_dimension_numbers<[2], [1], [1], [2], [0, 0, 0, 1, 1, 2], [0], [0]>} : vector<4x8x8xbf16>, vector<4x8x32xbf16>, vector<4x8x32xf32> -> vector<4x8x32xf32>
    "tpu.trace_stop"() : () -> ()
    %cst_18 = arith.constant dense<0.000000e+00> : vector<8x32xf32>
    %34 = vector.multi_reduction <add>, %33, %cst_18 [0] : vector<4x8x32xf32> to vector<8x32xf32>
    %c0_19 = arith.constant 0 : index
    %c0_20 = arith.constant 0 : index
    %35 = vector.load %arg4[%c0_19, %c0_20] : memref<1x32xf32, #tpu.memory_space<vmem>>, vector<1x32xf32>
    %36 = vector.broadcast %35 : vector<1x32xf32> to vector<8x32xf32>
    %37 = arith.addf %34, %36 : vector<8x32xf32>
    %38 = arith.addf %37, %1 : vector<8x32xf32>
    %c0_21 = arith.constant 0 : index
    %c0_22 = arith.constant 0 : index
    %c0_23 = arith.constant 0 : index
    %39 = vector.load %arg5[%c0_21, %c0_22, %c0_23] : memref<1x8x32xf32, #tpu.memory_space<vmem>>, vector<1x8x32xf32>
    %40 = vector.shape_cast %39 : vector<1x8x32xf32> to vector<8x32xf32>
    %41 = vector.shape_cast %38 : vector<8x32xf32> to vector<1x8x32xf32>
    tpu.vector_store %arg5[%c0_21, %c0_22, %c0_23], %41 {strides = array<i32>} : memref<1x8x32xf32, #tpu.memory_space<vmem>>, vector<1x8x32xf32>,
    return
  }
  func.func @transform_0(%arg0: i32) -> (i32, i32, i32) {
    %c0_i32 = arith.constant 0 : i32
    %c0_i32_0 = arith.constant 0 : i32
    %c0_i32_1 = arith.constant 0 : i32
    return %arg0, %c0_i32, %c0_i32_0 : i32, i32, i32
  }
  func.func @transform_1(%arg0: i32) -> (i32, i32, i32) {
    %c0_i32 = arith.constant 0 : i32
    %c0_i32_0 = arith.constant 0 : i32
    %c0_i32_1 = arith.constant 0 : i32
    %c0_i32_2 = arith.constant 0 : i32
    return %c0_i32, %c0_i32_0, %c0_i32_1 : i32, i32, i32
  }
  func.func @transform_2(%arg0: i32) -> (i32, i32, i32) {
    %c0_i32 = arith.constant 0 : i32
    %c0_i32_0 = arith.constant 0 : i32
    %c0_i32_1 = arith.constant 0 : i32
    %c0_i32_2 = arith.constant 0 : i32
    return %c0_i32, %c0_i32_0, %c0_i32_1 : i32, i32, i32
  }
  func.func @transform_3(%arg0: i32) -> (i32, i32) {
    %c0_i32 = arith.constant 0 : i32
    %c0_i32_0 = arith.constant 0 : i32
    %c0_i32_1 = arith.constant 0 : i32
    return %c0_i32, %c0_i32_0 : i32, i32
  }
  func.func @transform_4(%arg0: i32) -> (i32, i32, i32) {
    %c0_i32 = arith.constant 0 : i32
    %c0_i32_0 = arith.constant 0 : i32
    %c0_i32_1 = arith.constant 0 : i32
    return %arg0, %c0_i32, %c0_i32_0 : i32, i32, i32
  }
  func.func @transform_5(%arg0: i32) -> (i32, i32, i32, i32) {
    %c0_i32 = arith.constant 0 : i32
    %c0_i32_0 = arith.constant 0 : i32
    %c0_i32_1 = arith.constant 0 : i32
    %c0_i32_2 = arith.constant 0 : i32
    return %arg0, %c0_i32, %c0_i32_0, %c0_i32_1 : i32, i32, i32, i32
  }
}

</mosaic_0001>

<llo_original>
// kernel: tpu_custom_call.1
$region0: #{tpu_custom_call.1}
  #allocation0 [shape = 'u32[]', space=smem, size = 0x4, offset = 0x4, fixed_abs, tag = 'smem constant byte address 0x4 - core index']
  #allocation1 [shape = 'u32[144,128]{1,0:T(1,128)}', space=vmem, size = 0x12000, scoped, tag = 'internal scratch']
  %s0 = inlined_call_operand.hbm [shape: f32[2,8,32], index: 0, kind: input, shape index: {}]
  %s1 = inlined_call_operand.hbm [shape: bf16[12,8,32], index: 1, kind: input, shape index: {}]
  %s2 = inlined_call_operand.hbm [shape: bf16[4,8,32], index: 2, kind: input, shape index: {}]
  %s3 = inlined_call_operand.vmem [shape: f32[1,32], index: 3, kind: input, shape index: {}]
  %s4 = inlined_call_operand.hbm [shape: f32[2,8,32], index: 4, kind: output, shape index: {0}]
  %s5 = inlined_call_operand.hbm [shape: f32[2,4,8,8], index: 5, kind: output, shape index: {1}]
  %6 = xla_tuple %s4, %s5
  %s7 = sld [smem:[#allocation0]]
  $region69: #{tpu_custom_call.1} parent=0
    _
  %s9 = ssub.s32 1, %s7
  %s10 = scalar_select 0, %s9, %s7
  $region1: #{tpu_custom_call.1} parent=0
    #allocation2 [shape = 'u8[8192]{0}', space=vmem, size = 0x2000, scoped, tag = 'input window, operand 0']
    #allocation3 [shape = 's32[2]{0}', space=sflag, size = 0x8, scoped, tag = 'scoped memory for tpu_custom_call.1']
    #allocation4 [shape = 's32[2]{0}', space=sflag, size = 0x8, scoped, tag = 'scoped memory for tpu_custom_call.1']
    #allocation5 [shape = 'u8[24576]{0}', space=vmem, size = 0x6000, scoped, tag = 'input window, operand 1, single buffered']
    #allocation6 [shape = 's32[1]{0}', space=sflag, size = 0x4, scoped, tag = 'scoped memory for tpu_custom_call.1']
    #allocation7 [shape = 'u8[8192]{0}', space=vmem, size = 0x2000, scoped, tag = 'input window, operand 2, single buffered']
    #allocation8 [shape = 'u8[8192]{0}', space=vmem, size = 0x2000, scoped, tag = 'output window, operand 0']
    #allocation9 [shape = 'u8[32768]{0}', space=vmem, size = 0x8000, scoped, tag = 'output window, operand 1']
    #allocation10 [shape = 's32[2]{0}', space=sflag, size = 0x8, scoped, tag = 'scoped memory for tpu_custom_call.1']
    %11 = vsyncpa [#allocation3], 0
    %s12 = scalar_lea.sflag [#allocation3], 1
    %13 = vsyncpa %s12, 0
    %14 = vsyncpa [#allocation6], 0
    %15 = vsyncpa [#allocation4], 0
    %s16 = scalar_lea.sflag [#allocation4], 1
    %17 = vsyncpa %s16, 0
    %18 = vsyncpa [#allocation10], 0
    %s19 = scalar_lea.sflag [#allocation10], 1
    %20 = vsyncpa %s19, 0
    loop: start=0, step=1, limit=4
    $region2: #{tpu_custom_call.1} parent=1 // loop_pre_header
      _
    $region3: #{tpu_custom_call.1} parent=1 // loop_header
      %s22 = sphi 0, %s26
      %p23 = scmp.ge.s32.totalorder %s22, 4
      %s32 = sphi 0, %s34
      %s35 = sphi 0, %s32
      %s36 = sphi 0, %s35
      %s52 = sphi 0, %s36
      %s56 = sphi 0, %s56
      %s58 = sphi 0, %s56
      %s59 = sphi 0, %s58
      %s73 = sphi 0, %s59
      %s77 = sphi 0, %s77
      %s79 = sphi 0, %s77
      %s80 = sphi 0, %s79
      %s94 = sphi 0, %s80
      %s98 = sphi 0, %s98
      %s100 = sphi 0, %s98
      %s101 = sphi 0, %s100
      %s115 = sphi 0, %s101
      %s121 = sphi 0, %s123
      %s124 = sphi 0, %s121
      %s125 = sphi 0, %s124
      %s141 = sphi 0, %s125
      %s147 = sphi 0, %s149
      %s150 = sphi 0, %s147
      %s151 = sphi 0, %s150
      %s167 = sphi 0, %s151
    $region4: #{tpu_custom_call.1} parent=1 // loop_header_branch
      %25 = sbr.rel (%p23) target = $region8
    $region5: #{tpu_custom_call.1} parent=1 // loop_body
      %s27 = ssub.s32 %s22, 1
      %s28 = ssub.s32 %s22, 2
      %s29 = sadd.s32 %s22, 1
      %s30 = ssub.s32 %s22, %s29
      %p31 = scmp.eq.s32.totalorder %s30, 0
      %s33 = sadd.s32 %s32, 1
      %s34 = scalar_select %p31, %s32, %s33
      %p37 = pneg %p31
      %p38 = scmp.eq.s32.totalorder %s22, 1
      %p39 = por %p37, %p38
      %p40 = scmp.ne.s32.totalorder %s32, %s35
      %p41 = scmp.eq.s32.totalorder %s22, 0
      %p42 = por %p40, %p41
      %p43 = scmp.ne.s32.totalorder %s32, %s35
      %p44 = scmp.eq.s32.totalorder %s27, 1
      %p45 = por %p43, %p44
      %p46 = scmp.ne.s32.totalorder %s35, %s36
      %p47 = scmp.eq.s32.totalorder %s27, 0
      %p48 = por %p46, %p47
      %p49 = scmp.ne.s32.totalorder %s35, %s36
      %p50 = scmp.eq.s32.totalorder %s28, 1
      %p51 = por %p49, %p50
      %p53 = scmp.ne.s32.totalorder %s36, %s52
      %p54 = scmp.eq.s32.totalorder %s28, 0
      %p55 = por %p53, %p54
      %s57 = sadd.s32 %s56, 1
      %p60 = scmp.eq.s32.totalorder %s22, 1
      %p61 = scmp.ne.s32.totalorder %s56, %s58
      %p62 = scmp.eq.s32.totalorder %s22, 0
      %p63 = por %p61, %p62
      %p64 = scmp.ne.s32.totalorder %s56, %s58
      %p65 = scmp.eq.s32.totalorder %s27, 1
      %p66 = por %p64, %p65
      %p67 = scmp.ne.s32.totalorder %s58, %s59
      %p68 = scmp.eq.s32.totalorder %s27, 0
      %p69 = por %p67, %p68
      %p70 = scmp.ne.s32.totalorder %s58, %s59
      %p71 = scmp.eq.s32.totalorder %s28, 1
      %p72 = por %p70, %p71
      %p74 = scmp.ne.s32.totalorder %s59, %s73
      %p75 = scmp.eq.s32.totalorder %s28, 0
      %p76 = por %p74, %p75
      %s78 = sadd.s32 %s77, 1
      %p81 = scmp.eq.s32.totalorder %s22, 1
      %p82 = scmp.ne.s32.totalorder %s77, %s79
      %p83 = scmp.eq.s32.totalorder %s22, 0
      %p84 = por %p82, %p83
      %p85 = scmp.ne.s32.totalorder %s77, %s79
      %p86 = scmp.eq.s32.totalorder %s27, 1
      %p87 = por %p85, %p86
      %p88 = scmp.ne.s32.totalorder %s79, %s80
      %p89 = scmp.eq.s32.totalorder %s27, 0
      %p90 = por %p88, %p89
      %p91 = scmp.ne.s32.totalorder %s79, %s80
      %p92 = scmp.eq.s32.totalorder %s28, 1
      %p93 = por %p91, %p92
      %p95 = scmp.ne.s32.totalorder %s80, %s94
      %p96 = scmp.eq.s32.totalorder %s28, 0
      %p97 = por %p95, %p96
      %s99 = sadd.s32 %s98, 1
      %p102 = scmp.eq.s32.totalorder %s22, 1
      %p103 = scmp.ne.s32.totalorder %s98, %s100
      %p104 = scmp.eq.s32.totalorder %s22, 0
      %p105 = por %p103, %p104
      %p106 = scmp.ne.s32.totalorder %s98, %s100
      %p107 = scmp.eq.s32.totalorder %s27, 1
      %p108 = por %p106, %p107
      %p109 = scmp.ne.s32.totalorder %s100, %s101
      %p110 = scmp.eq.s32.totalorder %s27, 0
      %p111 = por %p109, %p110
      %p112 = scmp.ne.s32.totalorder %s100, %s101
      %p113 = scmp.eq.s32.totalorder %s28, 1
      %p114 = por %p112, %p113
      %p116 = scmp.ne.s32.totalorder %s101, %s115
      %p117 = scmp.eq.s32.totalorder %s28, 0
      %p118 = por %p116, %p117
      %s119 = ssub.s32 %s22, %s29
      %p120 = scmp.eq.s32.totalorder %s119, 0
      %s122 = sadd.s32 %s121, 1
      %s123 = scalar_select %p120, %s121, %s122
      %p126 = pneg %p120
      %p127 = scmp.eq.s32.totalorder %s22, 1
      %p128 = por %p126, %p127
      %p129 = scmp.ne.s32.totalorder %s121, %s124
      %p130 = scmp.eq.s32.totalorder %s22, 0
      %p131 = por %p129, %p130
      %p132 = scmp.ne.s32.totalorder %s121, %s124
      %p133 = scmp.eq.s32.totalorder %s27, 1
      %p134 = por %p132, %p133
      %p135 = scmp.ne.s32.totalorder %s124, %s125
      %p136 = scmp.eq.s32.totalorder %s27, 0
      %p137 = por %p135, %p136
      %p138 = scmp.ne.s32.totalorder %s124, %s125
      %p139 = scmp.eq.s32.totalorder %s28, 1
      %p140 = por %p138, %p139
      %p142 = scmp.ne.s32.totalorder %s125, %s141
      %p143 = scmp.eq.s32.totalorder %s28, 0
      %p144 = por %p142, %p143
      %s145 = ssub.s32 %s22, %s29
      %p146 = scmp.eq.s32.totalorder %s145, 0
      %s148 = sadd.s32 %s147, 1
      %s149 = scalar_select %p146, %s147, %s148
      %p152 = pneg %p146
      %p153 = scmp.eq.s32.totalorder %s22, 1
      %p154 = por %p152, %p153
      %p155 = scmp.ne.s32.totalorder %s147, %s150
      %p156 = scmp.eq.s32.totalorder %s22, 0
      %p157 = por %p155, %p156
      %p158 = scmp.ne.s32.totalorder %s147, %s150
      %p159 = scmp.eq.s32.totalorder %s27, 1
      %p160 = por %p158, %p159
      %p161 = scmp.ne.s32.totalorder %s150, %s151
      %p162 = scmp.eq.s32.totalorder %s27, 0
      %p163 = por %p161, %p162
      %p164 = scmp.ne.s32.totalorder %s150, %s151
      %p165 = scmp.eq.s32.totalorder %s28, 1
      %p166 = por %p164, %p165
      %p168 = scmp.ne.s32.totalorder %s151, %s167
      %p169 = scmp.eq.s32.totalorder %s28, 0
      %p170 = por %p168, %p169
      %p171 = scmp.le.s32.totalorder 1, %s22
      %p172 = scmp.lt.s32.totalorder %s22, 3
      %p173 = pnand %p171, %p172
      %p174 = pneg %p173
      // Predicated region
      $region9: #{tpu_custom_call.1} parent=5 // pred_check
        _
      $region10: #{tpu_custom_call.1} parent=5 // pred_check_branch
        %176 = sbr.rel (%p173) target = $region12
      $region11: #{tpu_custom_call.1} parent=5 // pred_region
        %s177 = ssub.s32 %s22, 1
        // Predicated region
        $region13: #{tpu_custom_call.1} parent=11 // pred_check
          %p178 = pneg %p69
        $region14: #{tpu_custom_call.1} parent=11 // pred_check_branch
          %180 = sbr.rel (%p178) target = $region16
        $region15: #{tpu_custom_call.1} parent=11 // pred_region
          %s182 = ssub.s32 768, 768
          %183 = vsyncadd [#allocation6], %s182
          %s184 = sshll.u32 [#allocation5], 4
          %s185 = int_to_ptr.vmem [resolvable:$true] %s184
          %190 = dma.hbm_to_vmem [thread:$0]  %s1, 768, %s185, [#allocation6], 64, 64, 4
        $region16: #{tpu_custom_call.1} parent=11 // pred_fallthru
          _
        // Predicated region
        $region17: #{tpu_custom_call.1} parent=11 // pred_check
          %p191 = pneg %p90
        $region18: #{tpu_custom_call.1} parent=11 // pred_check_branch
          %193 = sbr.rel (%p191) target = $region20
        $region19: #{tpu_custom_call.1} parent=11 // pred_region
          %s195 = ssub.s32 256, 256
          %196 = vsyncadd [#allocation6], %s195
          %s197 = sshll.u32 [#allocation7], 4
          %s198 = int_to_ptr.vmem [resolvable:$true] %s197
          %203 = dma.hbm_to_vmem [thread:$0]  %s2, 256, %s198, [#allocation6], 64, 64, 4
        $region20: #{tpu_custom_call.1} parent=11 // pred_fallthru
          _
        // Predicated region
        $region21: #{tpu_custom_call.1} parent=11 // pred_check
          %p204 = pneg %p111
        $region22: #{tpu_custom_call.1} parent=11 // pred_check_branch
          %206 = sbr.rel (%p204) target = $region24
        $region23: #{tpu_custom_call.1} parent=11 // pred_region
          _
        $region24: #{tpu_custom_call.1} parent=11 // pred_fallthru
          _
      $region12: #{tpu_custom_call.1} parent=5 // pred_fallthru
        _
      %p207 = scmp.lt.s32.totalorder %s22, 2
      // Predicated region
      $region25: #{tpu_custom_call.1} parent=5 // pred_check
        %p208 = pneg %p207
      $region26: #{tpu_custom_call.1} parent=5 // pred_check_branch
        %210 = sbr.rel (%p208) target = $region28
      $region27: #{tpu_custom_call.1} parent=5 // pred_region
        // Predicated region
        $region29: #{tpu_custom_call.1} parent=27 // pred_check
          %p211 = pneg %p42
        $region30: #{tpu_custom_call.1} parent=27 // pred_check_branch
          %213 = sbr.rel (%p211) target = $region32
        $region31: #{tpu_custom_call.1} parent=27 // pred_region
          %s214 = sand.u32 %s32, 1
          %s215 = scalar_lea.sflag [#allocation3], %s214
          %s216 = sand.u32 %s32, 1
          %s217 = smul.addr %s216, 8
          %s218 = scalar_lea.vmem [#allocation2], %s217
          %s220 = ssub.s32 128, 128
          %221 = vsyncadd %s215, %s220
          %s222 = smul.addr %s22, 128
          %s223 = scalar_lea.hbm %s0, %s222
          %s225 = sshll.u32 %s218, 4
          %s226 = int_to_ptr.vmem [resolvable:$true] %s225
          %228 = dma.hbm_to_vmem [thread:$0]  %s223, 128, %s226, %s215
        $region32: #{tpu_custom_call.1} parent=27 // pred_fallthru
          _
      $region28: #{tpu_custom_call.1} parent=5 // pred_fallthru
        _
      %p229 = scmp.le.s32.totalorder 1, %s22
      %p230 = scmp.lt.s32.totalorder %s22, 3
      %p231 = pnand %p229, %p230
      %p232 = pneg %p231
      // Predicated region
      $region33: #{tpu_custom_call.1} parent=5 // pred_check
        _
      $region34: #{tpu_custom_call.1} parent=5 // pred_check_branch
        %234 = sbr.rel (%p231) target = $region36
      $region35: #{tpu_custom_call.1} parent=5 // pred_region
        %s235 = ssub.s32 %s22, 1
        %s236 = sand.u32 %s35, 1
        %s237 = scalar_lea.sflag [#allocation3], %s236
        %s238 = sand.u32 %s35, 1
        %s239 = smul.addr %s238, 8
        %s240 = scalar_lea.vmem [#allocation2], %s239
        // Predicated region
        $region37: #{tpu_custom_call.1} parent=35 // pred_check
          %p241 = pneg %p48
        $region38: #{tpu_custom_call.1} parent=35 // pred_check_branch
          %243 = sbr.rel (%p241) target = $region40
        $region39: #{tpu_custom_call.1} parent=35 // pred_region
          %244 = dma.done %s237, 128
        $region40: #{tpu_custom_call.1} parent=35 // pred_fallthru
          _
        // Predicated region
        $region41: #{tpu_custom_call.1} parent=35 // pred_check
          %p245 = pneg %p69
        $region42: #{tpu_custom_call.1} parent=35 // pred_check_branch
          %247 = sbr.rel (%p245) target = $region44
        $region43: #{tpu_custom_call.1} parent=35 // pred_region
          %248 = dma.done [#allocation6], 768
        $region44: #{tpu_custom_call.1} parent=35 // pred_fallthru
          _
        // Predicated region
        $region45: #{tpu_custom_call.1} parent=35 // pred_check
          %p249 = pneg %p90
        $region46: #{tpu_custom_call.1} parent=35 // pred_check_branch
          %251 = sbr.rel (%p249) target = $region48
        $region47: #{tpu_custom_call.1} parent=35 // pred_region
          %252 = dma.done [#allocation6], 256
        $region48: #{tpu_custom_call.1} parent=35 // pred_fallthru
          _
        %s253 = sand.u32 %s35, 1
        %s254 = scalar_lea.sflag [#allocation3], %s253
        %s255 = sand.u32 %s35, 1
        %s256 = smul.addr %s255, 8
        %s257 = scalar_lea.vmem [#allocation2], %s256
        %p258 = pneg %p48
        %p259 = pneg %p45
        %p260 = pneg %p69
        %p261 = pneg %p66
        %p262 = pneg %p90
        %p263 = pneg %p87
        %p264 = pneg %p111
        %p265 = pneg %p108
        %p266 = pneg %p137
        %p267 = pneg %p134
        %s268 = sand.u32 %s124, 1
        %s269 = scalar_lea.sflag [#allocation4], %s268
        %s270 = sand.u32 %s124, 1
        %s271 = smul.addr %s270, 8
        %s272 = scalar_lea.vmem [#allocation8], %s271
        %p273 = pneg %p163
        %p274 = pneg %p160
        %s275 = sand.u32 %s150, 1
        %s276 = scalar_lea.sflag [#allocation10], %s275
        %s277 = sand.u32 %s150, 1
        %s278 = smul.addr %s277, 32
        %s279 = scalar_lea.vmem [#allocation9], %s278
        %v281 = vld [vmem:[%s240] sm:$0xff]
        %v282 = vpack.c.bf16 %v281, %v281
        %v283 = vld [vmem:[#allocation5] sm:$0xf]
        %v284 = vld [vmem:[#allocation5 + $0x4] sm:$0xf]
        %v285 = vld [vmem:[#allocation5 + $0x8] sm:$0xf]
        %v286 = vld [vmem:[#allocation5 + $0xc] sm:$0xf]
        %v287 = vld [vmem:[#allocation5 + $0x10] sm:$0xf]
        %v288 = vld [vmem:[#allocation5 + $0x14] sm:$0xf]
        %v289 = vld [vmem:[#allocation5 + $0x18] sm:$0xf]
        %v290 = vld [vmem:[#allocation5 + $0x1c] sm:$0xf]
        %v291 = vld [vmem:[#allocation5 + $0x20] sm:$0xf]
        %v292 = vld [vmem:[#allocation5 + $0x24] sm:$0xf]
        %v293 = vld [vmem:[#allocation5 + $0x28] sm:$0xf]
        %v294 = vld [vmem:[#allocation5 + $0x2c] sm:$0xf]
        %vm295 = vcmask 261120
        %v297 = vsel %vm295, %v282, 0
        %v300 = vsel %vm295, %v283, 0
        %302 = vmatprep.subr.bf16.mxu0 0
        %303 = vmatpush1.bf16.xpose.msra.mxu0 0
        %304 = vmatprep.subr.bf16.mxu0 0
        %305 = vmatpush1.bf16.xpose.msra.mxu0 0
        %306 = vmatprep.subr.bf16.mxu0 0
        %307 = vmatpush1.bf16.xpose.msra.mxu0 0
        %308 = vmatprep.subr.bf16.mxu0 0
        %309 = vmatpush1.bf16.xpose.msra.mxu0 0
        %310 = vmatprep.subr.bf16.mxu0 0
        %311 = vmatpush1.bf16.xpose.msra.mxu0 0
        %312 = vmatprep.subr.bf16.mxu0 0
        %313 = vmatpush1.bf16.xpose.msra.mxu0 0
        %314 = vmatprep.subr.bf16.mxu0 0
        %315 = vmatpush1.bf16.xpose.msra.mxu0 0
        %316 = vmatprep.subr.bf16.mxu0 0
        %317 = vmatpush1.bf16.xpose.msra.mxu0 %v300
        %318 = vmatprep.subr.bf16.mxu0 0
        %319 = vmatpush2.bf16.xpose.msra.mxu0 0
        %320 = vmatprep.subr.bf16.mxu0 0
        %321 = vmatpush2.bf16.xpose.msra.mxu0 0
        %322 = vmatprep.subr.bf16.mxu0 0
        %323 = vmatpush2.bf16.xpose.msra.mxu0 0
        %324 = vmatprep.subr.bf16.mxu0 0
        %325 = vmatpush2.bf16.xpose.msra.mxu0 0
        %326 = vmatprep.subr.bf16.mxu0 0
        %327 = vmatpush2.bf16.xpose.msra.mxu0 0
        %328 = vmatprep.subr.bf16.mxu0 0
        %329 = vmatpush2.bf16.xpose.msra.mxu0 0
        %330 = vmatprep.subr.bf16.mxu0 0
        %331 = vmatpush2.bf16.xpose.msra.mxu0 0
        %332 = vmatprep.subr.bf16.mxu0 0
        %333 = vmatpush2.bf16.xpose.msra.mxu0 0
        %334 = vmatprep.mubr.bf16.mxu0 0
        %335 = vmatmul.mubr.bf16.gmra.mxu0 %v297
        %v336 = vpop.f32.mrf.mxu0
        %v337 = vadd.f32 0.0, %v336
        %v338 = vpop.f32.mrf.mxu0
        %v339 = vpop.f32.mrf.mxu0
        %v340 = vpop.f32.mrf.mxu0
        %341 = vdwg.mxu0
        %v343 = vsel %vm295, %v284, 0
        %345 = vmatprep.subr.bf16.mxu0 0
        %346 = vmatpush1.bf16.xpose.msra.mxu0 0
        %347 = vmatprep.subr.bf16.mxu0 0
        %348 = vmatpush1.bf16.xpose.msra.mxu0 0
        %349 = vmatprep.subr.bf16.mxu0 0
        %350 = vmatpush1.bf16.xpose.msra.mxu0 0
        %351 = vmatprep.subr.bf16.mxu0 0
        %352 = vmatpush1.bf16.xpose.msra.mxu0 0
        %353 = vmatprep.subr.bf16.mxu0 0
        %354 = vmatpush1.bf16.xpose.msra.mxu0 0
        %355 = vmatprep.subr.bf16.mxu0 0
        %356 = vmatpush1.bf16.xpose.msra.mxu0 0
        %357 = vmatprep.subr.bf16.mxu0 0
        %358 = vmatpush1.bf16.xpose.msra.mxu0 0
        %359 = vmatprep.subr.bf16.mxu0 0
        %360 = vmatpush1.bf16.xpose.msra.mxu0 %v343
        %361 = vmatprep.subr.bf16.mxu0 0
        %362 = vmatpush2.bf16.xpose.msra.mxu0 0
        %363 = vmatprep.subr.bf16.mxu0 0
        %364 = vmatpush2.bf16.xpose.msra.mxu0 0
        %365 = vmatprep.subr.bf16.mxu0 0
        %366 = vmatpush2.bf16.xpose.msra.mxu0 0
        %367 = vmatprep.subr.bf16.mxu0 0
        %368 = vmatpush2.bf16.xpose.msra.mxu0 0
        %369 = vmatprep.subr.bf16.mxu0 0
        %370 = vmatpush2.bf16.xpose.msra.mxu0 0
        %371 = vmatprep.subr.bf16.mxu0 0
        %372 = vmatpush2.bf16.xpose.msra.mxu0 0
        %373 = vmatprep.subr.bf16.mxu0 0
        %374 = vmatpush2.bf16.xpose.msra.mxu0 0
        %375 = vmatprep.subr.bf16.mxu0 0
        %376 = vmatpush2.bf16.xpose.msra.mxu0 0
        %377 = vmatprep.mubr.bf16.mxu0 0
        %378 = vmatmul.mubr.bf16.gmra.mxu0 %v297
        %v379 = vpop.f32.mrf.mxu0
        %v380 = vadd.f32 0.0, %v379
        %v381 = vpop.f32.mrf.mxu0
        %v382 = vpop.f32.mrf.mxu0
        %v383 = vpop.f32.mrf.mxu0
        %384 = vdwg.mxu0
        %v386 = vsel %vm295, %v285, 0
        %388 = vmatprep.subr.bf16.mxu0 0
        %389 = vmatpush1.bf16.xpose.msra.mxu0 0
        %390 = vmatprep.subr.bf16.mxu0 0
        %391 = vmatpush1.bf16.xpose.msra.mxu0 0
        %392 = vmatprep.subr.bf16.mxu0 0
        %393 = vmatpush1.bf16.xpose.msra.mxu0 0
        %394 = vmatprep.subr.bf16.mxu0 0
        %395 = vmatpush1.bf16.xpose.msra.mxu0 0
        %396 = vmatprep.subr.bf16.mxu0 0
        %397 = vmatpush1.bf16.xpose.msra.mxu0 0
        %398 = vmatprep.subr.bf16.mxu0 0
        %399 = vmatpush1.bf16.xpose.msra.mxu0 0
        %400 = vmatprep.subr.bf16.mxu0 0
        %401 = vmatpush1.bf16.xpose.msra.mxu0 0
        %402 = vmatprep.subr.bf16.mxu0 0
        %403 = vmatpush1.bf16.xpose.msra.mxu0 %v386
        %404 = vmatprep.subr.bf16.mxu0 0
        %405 = vmatpush2.bf16.xpose.msra.mxu0 0
        %406 = vmatprep.subr.bf16.mxu0 0
        %407 = vmatpush2.bf16.xpose.msra.mxu0 0
        %408 = vmatprep.subr.bf16.mxu0 0
        %409 = vmatpush2.bf16.xpose.msra.mxu0 0
        %410 = vmatprep.subr.bf16.mxu0 0
        %411 = vmatpush2.bf16.xpose.msra.mxu0 0
        %412 = vmatprep.subr.bf16.mxu0 0
        %413 = vmatpush2.bf16.xpose.msra.mxu0 0
        %414 = vmatprep.subr.bf16.mxu0 0
        %415 = vmatpush2.bf16.xpose.msra.mxu0 0
        %416 = vmatprep.subr.bf16.mxu0 0
        %417 = vmatpush2.bf16.xpose.msra.mxu0 0
        %418 = vmatprep.subr.bf16.mxu0 0
        %419 = vmatpush2.bf16.xpose.msra.mxu0 0
        %420 = vmatprep.mubr.bf16.mxu0 0
        %421 = vmatmul.mubr.bf16.gmra.mxu0 %v297
        %v422 = vpop.f32.mrf.mxu0
        %v423 = vadd.f32 0.0, %v422
        %v424 = vpop.f32.mrf.mxu0
        %v425 = vpop.f32.mrf.mxu0
        %v426 = vpop.f32.mrf.mxu0
        %427 = vdwg.mxu0
        %v429 = vsel %vm295, %v286, 0
        %431 = vmatprep.subr.bf16.mxu0 0
        %432 = vmatpush1.bf16.xpose.msra.mxu0 0
        %433 = vmatprep.subr.bf16.mxu0 0
        %434 = vmatpush1.bf16.xpose.msra.mxu0 0
        %435 = vmatprep.subr.bf16.mxu0 0
        %436 = vmatpush1.bf16.xpose.msra.mxu0 0
        %437 = vmatprep.subr.bf16.mxu0 0
        %438 = vmatpush1.bf16.xpose.msra.mxu0 0
        %439 = vmatprep.subr.bf16.mxu0 0
        %440 = vmatpush1.bf16.xpose.msra.mxu0 0
        %441 = vmatprep.subr.bf16.mxu0 0
        %442 = vmatpush1.bf16.xpose.msra.mxu0 0
        %443 = vmatprep.subr.bf16.mxu0 0
        %444 = vmatpush1.bf16.xpose.msra.mxu0 0
        %445 = vmatprep.subr.bf16.mxu0 0
        %446 = vmatpush1.bf16.xpose.msra.mxu0 %v429
        %447 = vmatprep.subr.bf16.mxu0 0
        %448 = vmatpush2.bf16.xpose.msra.mxu0 0
        %449 = vmatprep.subr.bf16.mxu0 0
        %450 = vmatpush2.bf16.xpose.msra.mxu0 0
        %451 = vmatprep.subr.bf16.mxu0 0
        %452 = vmatpush2.bf16.xpose.msra.mxu0 0
        %453 = vmatprep.subr.bf16.mxu0 0
        %454 = vmatpush2.bf16.xpose.msra.mxu0 0
        %455 = vmatprep.subr.bf16.mxu0 0
        %456 = vmatpush2.bf16.xpose.msra.mxu0 0
        %457 = vmatprep.subr.bf16.mxu0 0
        %458 = vmatpush2.bf16.xpose.msra.mxu0 0
        %459 = vmatprep.subr.bf16.mxu0 0
        %460 = vmatpush2.bf16.xpose.msra.mxu0 0
        %461 = vmatprep.subr.bf16.mxu0 0
        %462 = vmatpush2.bf16.xpose.msra.mxu0 0
        %463 = vmatprep.mubr.bf16.mxu0 0
        %464 = vmatmul.mubr.bf16.gmra.mxu0 %v297
        %v465 = vpop.f32.mrf.mxu0
        %v466 = vadd.f32 0.0, %v465
        %v467 = vpop.f32.mrf.mxu0
        %v468 = vpop.f32.mrf.mxu0
        %v469 = vpop.f32.mrf.mxu0
        %470 = vdwg.mxu0
        %v472 = vsel %vm295, %v287, 0
        %474 = vmatprep.subr.bf16.mxu0 0
        %475 = vmatpush1.bf16.xpose.msra.mxu0 0
        %476 = vmatprep.subr.bf16.mxu0 0
        %477 = vmatpush1.bf16.xpose.msra.mxu0 0
        %478 = vmatprep.subr.bf16.mxu0 0
        %479 = vmatpush1.bf16.xpose.msra.mxu0 0
        %480 = vmatprep.subr.bf16.mxu0 0
        %481 = vmatpush1.bf16.xpose.msra.mxu0 0
        %482 = vmatprep.subr.bf16.mxu0 0
        %483 = vmatpush1.bf16.xpose.msra.mxu0 0
        %484 = vmatprep.subr.bf16.mxu0 0
        %485 = vmatpush1.bf16.xpose.msra.mxu0 0
        %486 = vmatprep.subr.bf16.mxu0 0
        %487 = vmatpush1.bf16.xpose.msra.mxu0 0
        %488 = vmatprep.subr.bf16.mxu0 0
        %489 = vmatpush1.bf16.xpose.msra.mxu0 %v472
        %490 = vmatprep.subr.bf16.mxu0 0
        %491 = vmatpush2.bf16.xpose.msra.mxu0 0
        %492 = vmatprep.subr.bf16.mxu0 0
        %493 = vmatpush2.bf16.xpose.msra.mxu0 0
        %494 = vmatprep.subr.bf16.mxu0 0
        %495 = vmatpush2.bf16.xpose.msra.mxu0 0
        %496 = vmatprep.subr.bf16.mxu0 0
        %497 = vmatpush2.bf16.xpose.msra.mxu0 0
        %498 = vmatprep.subr.bf16.mxu0 0
        %499 = vmatpush2.bf16.xpose.msra.mxu0 0
        %500 = vmatprep.subr.bf16.mxu0 0
        %501 = vmatpush2.bf16.xpose.msra.mxu0 0
        %502 = vmatprep.subr.bf16.mxu0 0
        %503 = vmatpush2.bf16.xpose.msra.mxu0 0
        %504 = vmatprep.subr.bf16.mxu0 0
        %505 = vmatpush2.bf16.xpose.msra.mxu0 0
        %506 = vmatprep.mubr.bf16.mxu0 0
        %507 = vmatmul.mubr.bf16.gmra.mxu0 %v297
        %v508 = vpop.f32.mrf.mxu0
        %v509 = vadd.f32 0.0, %v508
        %v510 = vpop.f32.mrf.mxu0
        %v511 = vpop.f32.mrf.mxu0
        %v512 = vpop.f32.mrf.mxu0
        %513 = vdwg.mxu0
        %v515 = vsel %vm295, %v288, 0
        %517 = vmatprep.subr.bf16.mxu0 0
        %518 = vmatpush1.bf16.xpose.msra.mxu0 0
        %519 = vmatprep.subr.bf16.mxu0 0
        %520 = vmatpush1.bf16.xpose.msra.mxu0 0
        %521 = vmatprep.subr.bf16.mxu0 0
        %522 = vmatpush1.bf16.xpose.msra.mxu0 0
        %523 = vmatprep.subr.bf16.mxu0 0
        %524 = vmatpush1.bf16.xpose.msra.mxu0 0
        %525 = vmatprep.subr.bf16.mxu0 0
        %526 = vmatpush1.bf16.xpose.msra.mxu0 0
        %527 = vmatprep.subr.bf16.mxu0 0
        %528 = vmatpush1.bf16.xpose.msra.mxu0 0
        %529 = vmatprep.subr.bf16.mxu0 0
        %530 = vmatpush1.bf16.xpose.msra.mxu0 0
        %531 = vmatprep.subr.bf16.mxu0 0
        %532 = vmatpush1.bf16.xpose.msra.mxu0 %v515
        %533 = vmatprep.subr.bf16.mxu0 0
        %534 = vmatpush2.bf16.xpose.msra.mxu0 0
        %535 = vmatprep.subr.bf16.mxu0 0
        %536 = vmatpush2.bf16.xpose.msra.mxu0 0
        %537 = vmatprep.subr.bf16.mxu0 0
        %538 = vmatpush2.bf16.xpose.msra.mxu0 0
        %539 = vmatprep.subr.bf16.mxu0 0
        %540 = vmatpush2.bf16.xpose.msra.mxu0 0
        %541 = vmatprep.subr.bf16.mxu0 0
        %542 = vmatpush2.bf16.xpose.msra.mxu0 0
        %543 = vmatprep.subr.bf16.mxu0 0
        %544 = vmatpush2.bf16.xpose.msra.mxu0 0
        %545 = vmatprep.subr.bf16.mxu0 0
        %546 = vmatpush2.bf16.xpose.msra.mxu0 0
        %547 = vmatprep.subr.bf16.mxu0 0
        %548 = vmatpush2.bf16.xpose.msra.mxu0 0
        %549 = vmatprep.mubr.bf16.mxu0 0
        %550 = vmatmul.mubr.bf16.gmra.mxu0 %v297
        %v551 = vpop.f32.mrf.mxu0
        %v552 = vadd.f32 0.0, %v551
        %v553 = vpop.f32.mrf.mxu0
        %v554 = vpop.f32.mrf.mxu0
        %v555 = vpop.f32.mrf.mxu0
        %556 = vdwg.mxu0
        %v558 = vsel %vm295, %v289, 0
        %560 = vmatprep.subr.bf16.mxu0 0
        %561 = vmatpush1.bf16.xpose.msra.mxu0 0
        %562 = vmatprep.subr.bf16.mxu0 0
        %563 = vmatpush1.bf16.xpose.msra.mxu0 0
        %564 = vmatprep.subr.bf16.mxu0 0
        %565 = vmatpush1.bf16.xpose.msra.mxu0 0
        %566 = vmatprep.subr.bf16.mxu0 0
        %567 = vmatpush1.bf16.xpose.msra.mxu0 0
        %568 = vmatprep.subr.bf16.mxu0 0
        %569 = vmatpush1.bf16.xpose.msra.mxu0 0
        %570 = vmatprep.subr.bf16.mxu0 0
        %571 = vmatpush1.bf16.xpose.msra.mxu0 0
        %572 = vmatprep.subr.bf16.mxu0 0
        %573 = vmatpush1.bf16.xpose.msra.mxu0 0
        %574 = vmatprep.subr.bf16.mxu0 0
        %575 = vmatpush1.bf16.xpose.msra.mxu0 %v558
        %576 = vmatprep.subr.bf16.mxu0 0
        %577 = vmatpush2.bf16.xpose.msra.mxu0 0
        %578 = vmatprep.subr.bf16.mxu0 0
        %579 = vmatpush2.bf16.xpose.msra.mxu0 0
        %580 = vmatprep.subr.bf16.mxu0 0
        %581 = vmatpush2.bf16.xpose.msra.mxu0 0
        %582 = vmatprep.subr.bf16.mxu0 0
        %583 = vmatpush2.bf16.xpose.msra.mxu0 0
        %584 = vmatprep.subr.bf16.mxu0 0
        %585 = vmatpush2.bf16.xpose.msra.mxu0 0
        %586 = vmatprep.subr.bf16.mxu0 0
        %587 = vmatpush2.bf16.xpose.msra.mxu0 0
        %588 = vmatprep.subr.bf16.mxu0 0
        %589 = vmatpush2.bf16.xpose.msra.mxu0 0
        %590 = vmatprep.subr.bf16.mxu0 0
        %591 = vmatpush2.bf16.xpose.msra.mxu0 0
        %592 = vmatprep.mubr.bf16.mxu0 0
        %593 = vmatmul.mubr.bf16.gmra.mxu0 %v297
        %v594 = vpop.f32.mrf.mxu0
        %v595 = vadd.f32 0.0, %v594
        %v596 = vpop.f32.mrf.mxu0
        %v597 = vpop.f32.mrf.mxu0
        %v598 = vpop.f32.mrf.mxu0
        %599 = vdwg.mxu0
        %v601 = vsel %vm295, %v290, 0
        %603 = vmatprep.subr.bf16.mxu0 0
        %604 = vmatpush1.bf16.xpose.msra.mxu0 0
        %605 = vmatprep.subr.bf16.mxu0 0
        %606 = vmatpush1.bf16.xpose.msra.mxu0 0
        %607 = vmatprep.subr.bf16.mxu0 0
        %608 = vmatpush1.bf16.xpose.msra.mxu0 0
        %609 = vmatprep.subr.bf16.mxu0 0
        %610 = vmatpush1.bf16.xpose.msra.mxu0 0
        %611 = vmatprep.subr.bf16.mxu0 0
        %612 = vmatpush1.bf16.xpose.msra.mxu0 0
        %613 = vmatprep.subr.bf16.mxu0 0
        %614 = vmatpush1.bf16.xpose.msra.mxu0 0
        %615 = vmatprep.subr.bf16.mxu0 0
        %616 = vmatpush1.bf16.xpose.msra.mxu0 0
        %617 = vmatprep.subr.bf16.mxu0 0
        %618 = vmatpush1.bf16.xpose.msra.mxu0 %v601
        %619 = vmatprep.subr.bf16.mxu0 0
        %620 = vmatpush2.bf16.xpose.msra.mxu0 0
        %621 = vmatprep.subr.bf16.mxu0 0
        %622 = vmatpush2.bf16.xpose.msra.mxu0 0
        %623 = vmatprep.subr.bf16.mxu0 0
        %624 = vmatpush2.bf16.xpose.msra.mxu0 0
        %625 = vmatprep.subr.bf16.mxu0 0
        %626 = vmatpush2.bf16.xpose.msra.mxu0 0
        %627 = vmatprep.subr.bf16.mxu0 0
        %628 = vmatpush2.bf16.xpose.msra.mxu0 0
        %629 = vmatprep.subr.bf16.mxu0 0
        %630 = vmatpush2.bf16.xpose.msra.mxu0 0
        %631 = vmatprep.subr.bf16.mxu0 0
        %632 = vmatpush2.bf16.xpose.msra.mxu0 0
        %633 = vmatprep.subr.bf16.mxu0 0
        %634 = vmatpush2.bf16.xpose.msra.mxu0 0
        %635 = vmatprep.mubr.bf16.mxu0 0
        %636 = vmatmul.mubr.bf16.gmra.mxu0 %v297
        %v637 = vpop.f32.mrf.mxu0
        %v638 = vadd.f32 0.0, %v637
        %v639 = vpop.f32.mrf.mxu0
        %v640 = vpop.f32.mrf.mxu0
        %v641 = vpop.f32.mrf.mxu0
        %642 = vdwg.mxu0
        %v644 = vsel %vm295, %v291, 0
        %646 = vmatprep.subr.bf16.mxu0 0
        %647 = vmatpush1.bf16.xpose.msra.mxu0 0
        %648 = vmatprep.subr.bf16.mxu0 0
        %649 = vmatpush1.bf16.xpose.msra.mxu0 0
        %650 = vmatprep.subr.bf16.mxu0 0
        %651 = vmatpush1.bf16.xpose.msra.mxu0 0
        %652 = vmatprep.subr.bf16.mxu0 0
        %653 = vmatpush1.bf16.xpose.msra.mxu0 0
        %654 = vmatprep.subr.bf16.mxu0 0
        %655 = vmatpush1.bf16.xpose.msra.mxu0 0
        %656 = vmatprep.subr.bf16.mxu0 0
        %657 = vmatpush1.bf16.xpose.msra.mxu0 0
        %658 = vmatprep.subr.bf16.mxu0 0
        %659 = vmatpush1.bf16.xpose.msra.mxu0 0
        %660 = vmatprep.subr.bf16.mxu0 0
        %661 = vmatpush1.bf16.xpose.msra.mxu0 %v644
        %662 = vmatprep.subr.bf16.mxu0 0
        %663 = vmatpush2.bf16.xpose.msra.mxu0 0
        %664 = vmatprep.subr.bf16.mxu0 0
        %665 = vmatpush2.bf16.xpose.msra.mxu0 0
        %666 = vmatprep.subr.bf16.mxu0 0
        %667 = vmatpush2.bf16.xpose.msra.mxu0 0
        %668 = vmatprep.subr.bf16.mxu0 0
        %669 = vmatpush2.bf16.xpose.msra.mxu0 0
        %670 = vmatprep.subr.bf16.mxu0 0
        %671 = vmatpush2.bf16.xpose.msra.mxu0 0
        %672 = vmatprep.subr.bf16.mxu0 0
        %673 = vmatpush2.bf16.xpose.msra.mxu0 0
        %674 = vmatprep.subr.bf16.mxu0 0
        %675 = vmatpush2.bf16.xpose.msra.mxu0 0
        %676 = vmatprep.subr.bf16.mxu0 0
        %677 = vmatpush2.bf16.xpose.msra.mxu0 0
        %678 = vmatprep.mubr.bf16.mxu0 0
        %679 = vmatmul.mubr.bf16.gmra.mxu0 %v297
        %v680 = vpop.f32.mrf.mxu0
        %v681 = vadd.f32 0.0, %v680
        %v682 = vpop.f32.mrf.mxu0
        %v683 = vpop.f32.mrf.mxu0
        %v684 = vpop.f32.mrf.mxu0
        %685 = vdwg.mxu0
        %v687 = vsel %vm295, %v292, 0
        %689 = vmatprep.subr.bf16.mxu0 0
        %690 = vmatpush1.bf16.xpose.msra.mxu0 0
        %691 = vmatprep.subr.bf16.mxu0 0
        %692 = vmatpush1.bf16.xpose.msra.mxu0 0
        %693 = vmatprep.subr.bf16.mxu0 0
        %694 = vmatpush1.bf16.xpose.msra.mxu0 0
        %695 = vmatprep.subr.bf16.mxu0 0
        %696 = vmatpush1.bf16.xpose.msra.mxu0 0
        %697 = vmatprep.subr.bf16.mxu0 0
        %698 = vmatpush1.bf16.xpose.msra.mxu0 0
        %699 = vmatprep.subr.bf16.mxu0 0
        %700 = vmatpush1.bf16.xpose.msra.mxu0 0
        %701 = vmatprep.subr.bf16.mxu0 0
        %702 = vmatpush1.bf16.xpose.msra.mxu0 0
        %703 = vmatprep.subr.bf16.mxu0 0
        %704 = vmatpush1.bf16.xpose.msra.mxu0 %v687
        %705 = vmatprep.subr.bf16.mxu0 0
        %706 = vmatpush2.bf16.xpose.msra.mxu0 0
        %707 = vmatprep.subr.bf16.mxu0 0
        %708 = vmatpush2.bf16.xpose.msra.mxu0 0
        %709 = vmatprep.subr.bf16.mxu0 0
        %710 = vmatpush2.bf16.xpose.msra.mxu0 0
        %711 = vmatprep.subr.bf16.mxu0 0
        %712 = vmatpush2.bf16.xpose.msra.mxu0 0
        %713 = vmatprep.subr.bf16.mxu0 0
        %714 = vmatpush2.bf16.xpose.msra.mxu0 0
        %715 = vmatprep.subr.bf16.mxu0 0
        %716 = vmatpush2.bf16.xpose.msra.mxu0 0
        %717 = vmatprep.subr.bf16.mxu0 0
        %718 = vmatpush2.bf16.xpose.msra.mxu0 0
        %719 = vmatprep.subr.bf16.mxu0 0
        %720 = vmatpush2.bf16.xpose.msra.mxu0 0
        %721 = vmatprep.mubr.bf16.mxu0 0
        %722 = vmatmul.mubr.bf16.gmra.mxu0 %v297
        %v723 = vpop.f32.mrf.mxu0
        %v724 = vadd.f32 0.0, %v723
        %v725 = vpop.f32.mrf.mxu0
        %v726 = vpop.f32.mrf.mxu0
        %v727 = vpop.f32.mrf.mxu0
        %728 = vdwg.mxu0
        %v730 = vsel %vm295, %v293, 0
        %732 = vmatprep.subr.bf16.mxu0 0
        %733 = vmatpush1.bf16.xpose.msra.mxu0 0
        %734 = vmatprep.subr.bf16.mxu0 0
        %735 = vmatpush1.bf16.xpose.msra.mxu0 0
        %736 = vmatprep.subr.bf16.mxu0 0
        %737 = vmatpush1.bf16.xpose.msra.mxu0 0
        %738 = vmatprep.subr.bf16.mxu0 0
        %739 = vmatpush1.bf16.xpose.msra.mxu0 0
        %740 = vmatprep.subr.bf16.mxu0 0
        %741 = vmatpush1.bf16.xpose.msra.mxu0 0
        %742 = vmatprep.subr.bf16.mxu0 0
        %743 = vmatpush1.bf16.xpose.msra.mxu0 0
        %744 = vmatprep.subr.bf16.mxu0 0
        %745 = vmatpush1.bf16.xpose.msra.mxu0 0
        %746 = vmatprep.subr.bf16.mxu0 0
        %747 = vmatpush1.bf16.xpose.msra.mxu0 %v730
        %748 = vmatprep.subr.bf16.mxu0 0
        %749 = vmatpush2.bf16.xpose.msra.mxu0 0
        %750 = vmatprep.subr.bf16.mxu0 0
        %751 = vmatpush2.bf16.xpose.msra.mxu0 0
        %752 = vmatprep.subr.bf16.mxu0 0
        %753 = vmatpush2.bf16.xpose.msra.mxu0 0
        %754 = vmatprep.subr.bf16.mxu0 0
        %755 = vmatpush2.bf16.xpose.msra.mxu0 0
        %756 = vmatprep.subr.bf16.mxu0 0
        %757 = vmatpush2.bf16.xpose.msra.mxu0 0
        %758 = vmatprep.subr.bf16.mxu0 0
        %759 = vmatpush2.bf16.xpose.msra.mxu0 0
        %760 = vmatprep.subr.bf16.mxu0 0
        %761 = vmatpush2.bf16.xpose.msra.mxu0 0
        %762 = vmatprep.subr.bf16.mxu0 0
        %763 = vmatpush2.bf16.xpose.msra.mxu0 0
        %764 = vmatprep.mubr.bf16.mxu0 0
        %765 = vmatmul.mubr.bf16.gmra.mxu0 %v297
        %v766 = vpop.f32.mrf.mxu0
        %v767 = vadd.f32 0.0, %v766
        %v768 = vpop.f32.mrf.mxu0
        %v769 = vpop.f32.mrf.mxu0
        %v770 = vpop.f32.mrf.mxu0
        %771 = vdwg.mxu0
        %v773 = vsel %vm295, %v294, 0
        %775 = vmatprep.subr.bf16.mxu0 0
        %776 = vmatpush1.bf16.xpose.msra.mxu0 0
        %777 = vmatprep.subr.bf16.mxu0 0
        %778 = vmatpush1.bf16.xpose.msra.mxu0 0
        %779 = vmatprep.subr.bf16.mxu0 0
        %780 = vmatpush1.bf16.xpose.msra.mxu0 0
        %781 = vmatprep.subr.bf16.mxu0 0
        %782 = vmatpush1.bf16.xpose.msra.mxu0 0
        %783 = vmatprep.subr.bf16.mxu0 0
        %784 = vmatpush1.bf16.xpose.msra.mxu0 0
        %785 = vmatprep.subr.bf16.mxu0 0
        %786 = vmatpush1.bf16.xpose.msra.mxu0 0
        %787 = vmatprep.subr.bf16.mxu0 0
        %788 = vmatpush1.bf16.xpose.msra.mxu0 0
        %789 = vmatprep.subr.bf16.mxu0 0
        %790 = vmatpush1.bf16.xpose.msra.mxu0 %v773
        %791 = vmatprep.subr.bf16.mxu0 0
        %792 = vmatpush2.bf16.xpose.msra.mxu0 0
        %793 = vmatprep.subr.bf16.mxu0 0
        %794 = vmatpush2.bf16.xpose.msra.mxu0 0
        %795 = vmatprep.subr.bf16.mxu0 0
        %796 = vmatpush2.bf16.xpose.msra.mxu0 0
        %797 = vmatprep.subr.bf16.mxu0 0
        %798 = vmatpush2.bf16.xpose.msra.mxu0 0
        %799 = vmatprep.subr.bf16.mxu0 0
        %800 = vmatpush2.bf16.xpose.msra.mxu0 0
        %801 = vmatprep.subr.bf16.mxu0 0
        %802 = vmatpush2.bf16.xpose.msra.mxu0 0
        %803 = vmatprep.subr.bf16.mxu0 0
        %804 = vmatpush2.bf16.xpose.msra.mxu0 0
        %805 = vmatprep.subr.bf16.mxu0 0
        %806 = vmatpush2.bf16.xpose.msra.mxu0 0
        %807 = vmatprep.mubr.bf16.mxu0 0
        %808 = vmatmul.mubr.bf16.gmra.mxu0 %v297
        %v809 = vpop.f32.mrf.mxu0
        %v810 = vadd.f32 0.0, %v809
        %v811 = vpop.f32.mrf.mxu0
        %v812 = vpop.f32.mrf.mxu0
        %v813 = vpop.f32.mrf.mxu0
        %814 = vdwg.mxu0
        %v815 = vmul.f32 %v337, 0.35355338
        %v816 = vmul.f32 %v380, 0.35355338
        %v817 = vmul.f32 %v423, 0.35355338
        %v818 = vmul.f32 %v466, 0.35355338
        %v819 = vpack.c.bf16 %v815, %v815
        %v820 = vpack.c.bf16 %v816, %v816
        %v821 = vpack.c.bf16 %v817, %v817
        %v822 = vpack.c.bf16 %v818, %v818
        %v823 = vpack.c.bf16 %v509, %v509
        %v824 = vpack.c.bf16 %v552, %v552
        %v825 = vpack.c.bf16 %v595, %v595
        %v826 = vpack.c.bf16 %v638, %v638
        %v827 = vpack.c.bf16 %v681, %v681
        %v828 = vpack.c.bf16 %v724, %v724
        %v829 = vpack.c.bf16 %v767, %v767
        %v830 = vpack.c.bf16 %v810, %v810
        %vm831 = vcmask 64512
        %v833 = vsel %vm831, %v819, 0
        %v836 = vsel %vm831, %v823, 0
        %838 = vmatprep.subr.bf16.mxu0 0
        %839 = vmatpush1.bf16.xpose.msra.mxu0 0
        %840 = vmatprep.subr.bf16.mxu0 0
        %841 = vmatpush1.bf16.xpose.msra.mxu0 0
        %842 = vmatprep.subr.bf16.mxu0 0
        %843 = vmatpush1.bf16.xpose.msra.mxu0 0
        %844 = vmatprep.subr.bf16.mxu0 0
        %845 = vmatpush1.bf16.xpose.msra.mxu0 0
        %846 = vmatprep.subr.bf16.mxu0 0
        %847 = vmatpush1.bf16.xpose.msra.mxu0 0
        %848 = vmatprep.subr.bf16.mxu0 0
        %849 = vmatpush1.bf16.xpose.msra.mxu0 0
        %850 = vmatprep.subr.bf16.mxu0 0
        %851 = vmatpush1.bf16.xpose.msra.mxu0 0
        %852 = vmatprep.subr.bf16.mxu0 0
        %853 = vmatpush1.bf16.xpose.msra.mxu0 %v836
        %854 = vmatprep.subr.bf16.mxu0 0
        %855 = vmatpush2.bf16.xpose.msra.mxu0 0
        %856 = vmatprep.subr.bf16.mxu0 0
        %857 = vmatpush2.bf16.xpose.msra.mxu0 0
        %858 = vmatprep.subr.bf16.mxu0 0
        %859 = vmatpush2.bf16.xpose.msra.mxu0 0
        %860 = vmatprep.subr.bf16.mxu0 0
        %861 = vmatpush2.bf16.xpose.msra.mxu0 0
        %862 = vmatprep.subr.bf16.mxu0 0
        %863 = vmatpush2.bf16.xpose.msra.mxu0 0
        %864 = vmatprep.subr.bf16.mxu0 0
        %865 = vmatpush2.bf16.xpose.msra.mxu0 0
        %866 = vmatprep.subr.bf16.mxu0 0
        %867 = vmatpush2.bf16.xpose.msra.mxu0 0
        %868 = vmatprep.subr.bf16.mxu0 0
        %869 = vmatpush2.bf16.xpose.msra.mxu0 0
        %870 = vmatprep.mubr.bf16.mxu0 0
        %871 = vmatmul.mubr.bf16.gmra.mxu0 %v833
        %v872 = vpop.f32.mrf.mxu0
        %v873 = vadd.f32 0.0, %v872
        %v874 = vpop.f32.mrf.mxu0
        %v875 = vpop.f32.mrf.mxu0
        %v876 = vpop.f32.mrf.mxu0
        %877 = vdwg.mxu0
        %v879 = vsel %vm831, %v820, 0
        %v882 = vsel %vm831, %v824, 0
        %884 = vmatprep.subr.bf16.mxu0 0
        %885 = vmatpush1.bf16.xpose.msra.mxu0 0
        %886 = vmatprep.subr.bf16.mxu0 0
        %887 = vmatpush1.bf16.xpose.msra.mxu0 0
        %888 = vmatprep.subr.bf16.mxu0 0
        %889 = vmatpush1.bf16.xpose.msra.mxu0 0
        %890 = vmatprep.subr.bf16.mxu0 0
        %891 = vmatpush1.bf16.xpose.msra.mxu0 0
        %892 = vmatprep.subr.bf16.mxu0 0
        %893 = vmatpush1.bf16.xpose.msra.mxu0 0
        %894 = vmatprep.subr.bf16.mxu0 0
        %895 = vmatpush1.bf16.xpose.msra.mxu0 0
        %896 = vmatprep.subr.bf16.mxu0 0
        %897 = vmatpush1.bf16.xpose.msra.mxu0 0
        %898 = vmatprep.subr.bf16.mxu0 0
        %899 = vmatpush1.bf16.xpose.msra.mxu0 %v882
        %900 = vmatprep.subr.bf16.mxu0 0
        %901 = vmatpush2.bf16.xpose.msra.mxu0 0
        %902 = vmatprep.subr.bf16.mxu0 0
        %903 = vmatpush2.bf16.xpose.msra.mxu0 0
        %904 = vmatprep.subr.bf16.mxu0 0
        %905 = vmatpush2.bf16.xpose.msra.mxu0 0
        %906 = vmatprep.subr.bf16.mxu0 0
        %907 = vmatpush2.bf16.xpose.msra.mxu0 0
        %908 = vmatprep.subr.bf16.mxu0 0
        %909 = vmatpush2.bf16.xpose.msra.mxu0 0
        %910 = vmatprep.subr.bf16.mxu0 0
        %911 = vmatpush2.bf16.xpose.msra.mxu0 0
        %912 = vmatprep.subr.bf16.mxu0 0
        %913 = vmatpush2.bf16.xpose.msra.mxu0 0
        %914 = vmatprep.subr.bf16.mxu0 0
        %915 = vmatpush2.bf16.xpose.msra.mxu0 0
        %916 = vmatprep.mubr.bf16.mxu0 0
        %917 = vmatmul.mubr.bf16.gmra.mxu0 %v879
        %v918 = vpop.f32.mrf.mxu0
        %v919 = vadd.f32 0.0, %v918
        %v920 = vpop.f32.mrf.mxu0
        %v921 = vpop.f32.mrf.mxu0
        %v922 = vpop.f32.mrf.mxu0
        %923 = vdwg.mxu0
        %v925 = vsel %vm831, %v821, 0
        %v928 = vsel %vm831, %v825, 0
        %930 = vmatprep.subr.bf16.mxu0 0
        %931 = vmatpush1.bf16.xpose.msra.mxu0 0
        %932 = vmatprep.subr.bf16.mxu0 0
        %933 = vmatpush1.bf16.xpose.msra.mxu0 0
        %934 = vmatprep.subr.bf16.mxu0 0
        %935 = vmatpush1.bf16.xpose.msra.mxu0 0
        %936 = vmatprep.subr.bf16.mxu0 0
        %937 = vmatpush1.bf16.xpose.msra.mxu0 0
        %938 = vmatprep.subr.bf16.mxu0 0
        %939 = vmatpush1.bf16.xpose.msra.mxu0 0
        %940 = vmatprep.subr.bf16.mxu0 0
        %941 = vmatpush1.bf16.xpose.msra.mxu0 0
        %942 = vmatprep.subr.bf16.mxu0 0
        %943 = vmatpush1.bf16.xpose.msra.mxu0 0
        %944 = vmatprep.subr.bf16.mxu0 0
        %945 = vmatpush1.bf16.xpose.msra.mxu0 %v928
        %946 = vmatprep.subr.bf16.mxu0 0
        %947 = vmatpush2.bf16.xpose.msra.mxu0 0
        %948 = vmatprep.subr.bf16.mxu0 0
        %949 = vmatpush2.bf16.xpose.msra.mxu0 0
        %950 = vmatprep.subr.bf16.mxu0 0
        %951 = vmatpush2.bf16.xpose.msra.mxu0 0
        %952 = vmatprep.subr.bf16.mxu0 0
        %953 = vmatpush2.bf16.xpose.msra.mxu0 0
        %954 = vmatprep.subr.bf16.mxu0 0
        %955 = vmatpush2.bf16.xpose.msra.mxu0 0
        %956 = vmatprep.subr.bf16.mxu0 0
        %957 = vmatpush2.bf16.xpose.msra.mxu0 0
        %958 = vmatprep.subr.bf16.mxu0 0
        %959 = vmatpush2.bf16.xpose.msra.mxu0 0
        %960 = vmatprep.subr.bf16.mxu0 0
        %961 = vmatpush2.bf16.xpose.msra.mxu0 0
        %962 = vmatprep.mubr.bf16.mxu0 0
        %963 = vmatmul.mubr.bf16.gmra.mxu0 %v925
        %v964 = vpop.f32.mrf.mxu0
        %v965 = vadd.f32 0.0, %v964
        %v966 = vpop.f32.mrf.mxu0
        %v967 = vpop.f32.mrf.mxu0
        %v968 = vpop.f32.mrf.mxu0
        %969 = vdwg.mxu0
        %v971 = vsel %vm831, %v822, 0
        %v974 = vsel %vm831, %v826, 0
        %976 = vmatprep.subr.bf16.mxu0 0
        %977 = vmatpush1.bf16.xpose.msra.mxu0 0
        %978 = vmatprep.subr.bf16.mxu0 0
        %979 = vmatpush1.bf16.xpose.msra.mxu0 0
        %980 = vmatprep.subr.bf16.mxu0 0
        %981 = vmatpush1.bf16.xpose.msra.mxu0 0
        %982 = vmatprep.subr.bf16.mxu0 0
        %983 = vmatpush1.bf16.xpose.msra.mxu0 0
        %984 = vmatprep.subr.bf16.mxu0 0
        %985 = vmatpush1.bf16.xpose.msra.mxu0 0
        %986 = vmatprep.subr.bf16.mxu0 0
        %987 = vmatpush1.bf16.xpose.msra.mxu0 0
        %988 = vmatprep.subr.bf16.mxu0 0
        %989 = vmatpush1.bf16.xpose.msra.mxu0 0
        %990 = vmatprep.subr.bf16.mxu0 0
        %991 = vmatpush1.bf16.xpose.msra.mxu0 %v974
        %992 = vmatprep.subr.bf16.mxu0 0
        %993 = vmatpush2.bf16.xpose.msra.mxu0 0
        %994 = vmatprep.subr.bf16.mxu0 0
        %995 = vmatpush2.bf16.xpose.msra.mxu0 0
        %996 = vmatprep.subr.bf16.mxu0 0
        %997 = vmatpush2.bf16.xpose.msra.mxu0 0
        %998 = vmatprep.subr.bf16.mxu0 0
        %999 = vmatpush2.bf16.xpose.msra.mxu0 0
        %1000 = vmatprep.subr.bf16.mxu0 0
        %1001 = vmatpush2.bf16.xpose.msra.mxu0 0
        %1002 = vmatprep.subr.bf16.mxu0 0
        %1003 = vmatpush2.bf16.xpose.msra.mxu0 0
        %1004 = vmatprep.subr.bf16.mxu0 0
        %1005 = vmatpush2.bf16.xpose.msra.mxu0 0
        %1006 = vmatprep.subr.bf16.mxu0 0
        %1007 = vmatpush2.bf16.xpose.msra.mxu0 0
        %1008 = vmatprep.mubr.bf16.mxu0 0
        %1009 = vmatmul.mubr.bf16.gmra.mxu0 %v971
        %v1010 = vpop.f32.mrf.mxu0
        %v1011 = vadd.f32 0.0, %v1010
        %v1012 = vpop.f32.mrf.mxu0
        %v1013 = vpop.f32.mrf.mxu0
        %v1014 = vpop.f32.mrf.mxu0
        %1015 = vdwg.mxu0
        %v1016 = vsel %vm831, %v873, -inf
        %1017 = vmax.xlane.f32.xlu0 %v1016
        %v1018 = vpop.xlane.xlu0 %1017
        %v1019 = vsel %vm831, %v919, -inf
        %1020 = vmax.xlane.f32.xlu0 %v1019
        %v1021 = vpop.xlane.xlu0 %1020
        %v1022 = vsel %vm831, %v965, -inf
        %1023 = vmax.xlane.f32.xlu0 %v1022
        %v1024 = vpop.xlane.xlu0 %1023
        %v1025 = vsel %vm831, %v1011, -inf
        %1026 = vmax.xlane.f32.xlu0 %v1025
        %v1027 = vpop.xlane.xlu0 %1026
        %v1028 = vsub.f32 %v873, %v1018
        %v1029 = vsub.f32 %v919, %v1021
        %v1030 = vsub.f32 %v965, %v1024
        %v1031 = vsub.f32 %v1011, %v1027
        %v1032 = vmul.f32 %v1028, 1.442695
        %v1033 = vpow.pop %v1032
        %v1034 = vmul.f32 %v1029, 1.442695
        %v1035 = vpow.pop %v1034
        %v1036 = vmul.f32 %v1030, 1.442695
        %v1037 = vpow.pop %v1036
        %v1038 = vmul.f32 %v1031, 1.442695
        %v1039 = vpow.pop %v1038
        %v1040 = vsel %vm831, %v1033, 0.0
        %1041 = vadd.xlane.f32.xlu0 %v1040
        %v1042 = vpop.xlane.xlu0 %1041
        %v1043 = vsel %vm831, %v1035, 0.0
        %1044 = vadd.xlane.f32.xlu0 %v1043
        %v1045 = vpop.xlane.xlu0 %1044
        %v1046 = vsel %vm831, %v1037, 0.0
        %1047 = vadd.xlane.f32.xlu0 %v1046
        %v1048 = vpop.xlane.xlu0 %1047
        %v1049 = vsel %vm831, %v1039, 0.0
        %1050 = vadd.xlane.f32.xlu0 %v1049
        %v1051 = vpop.xlane.xlu0 %1050
        %v1052 = vrcp.pop %v1042
        %v1053 = vrcp.pop %v1045
        %v1054 = vrcp.pop %v1048
        %v1055 = vrcp.pop %v1051
        %v1056 = vmul.f32 %v1033, %v1052
        %v1057 = vmul.f32 %v1035, %v1053
        %v1058 = vmul.f32 %v1037, %v1054
        %v1059 = vmul.f32 %v1039, %v1055
        %1060 = vst.msk [vmem:[%s279] sm:$0xff] %vm831, %v1056
        %1061 = vst.msk [vmem:[%s279 + $0x8] sm:$0xff] %vm831, %v1057
        %1062 = vst.msk [vmem:[%s279 + $0x10] sm:$0xff] %vm831, %v1058
        %1063 = vst.msk [vmem:[%s279 + $0x18] sm:$0xff] %vm831, %v1059
        %v1064 = vpack.c.bf16 %v1056, %v1056
        %v1065 = vpack.c.bf16 %v1057, %v1057
        %v1066 = vpack.c.bf16 %v1058, %v1058
        %v1067 = vpack.c.bf16 %v1059, %v1059
        %v1069 = vsel %vm831, %v1064, 0
        %vm1071 = vcmask 1043456
        %v1073 = vsel %vm1071, %v827, 0
        %1075 = vmatprep.subr.bf16.mxu0 0
        %1076 = vmatpush1.bf16.msra.mxu0 0
        %1077 = vmatprep.subr.bf16.mxu0 0
        %1078 = vmatpush1.bf16.msra.mxu0 0
        %1079 = vmatprep.subr.bf16.mxu0 0
        %1080 = vmatpush1.bf16.msra.mxu0 0
        %1081 = vmatprep.subr.bf16.mxu0 0
        %1082 = vmatpush1.bf16.msra.mxu0 0
        %1083 = vmatprep.subr.bf16.mxu0 0
        %1084 = vmatpush1.bf16.msra.mxu0 0
        %1085 = vmatprep.subr.bf16.mxu0 0
        %1086 = vmatpush1.bf16.msra.mxu0 0
        %1087 = vmatprep.subr.bf16.mxu0 0
        %1088 = vmatpush1.bf16.msra.mxu0 0
        %1089 = vmatprep.subr.bf16.mxu0 0
        %1090 = vmatpush1.bf16.msra.mxu0 %v1073
        %1091 = vmatprep.subr.bf16.mxu0 0
        %1092 = vmatpush2.bf16.msra.mxu0 0
        %1093 = vmatprep.subr.bf16.mxu0 0
        %1094 = vmatpush2.bf16.msra.mxu0 0
        %1095 = vmatprep.subr.bf16.mxu0 0
        %1096 = vmatpush2.bf16.msra.mxu0 0
        %1097 = vmatprep.subr.bf16.mxu0 0
        %1098 = vmatpush2.bf16.msra.mxu0 0
        %1099 = vmatprep.subr.bf16.mxu0 0
        %1100 = vmatpush2.bf16.msra.mxu0 0
        %1101 = vmatprep.subr.bf16.mxu0 0
        %1102 = vmatpush2.bf16.msra.mxu0 0
        %1103 = vmatprep.subr.bf16.mxu0 0
        %1104 = vmatpush2.bf16.msra.mxu0 0
        %1105 = vmatprep.subr.bf16.mxu0 0
        %1106 = vmatpush2.bf16.msra.mxu0 0
        %1107 = vmatprep.mubr.bf16.mxu0 0
        %1108 = vmatmul.mubr.bf16.gmra.mxu0 %v1069
        %v1109 = vpop.f32.mrf.mxu0
        %v1110 = vadd.f32 0.0, %v1109
        %v1111 = vpop.f32.mrf.mxu0
        %v1112 = vpop.f32.mrf.mxu0
        %v1113 = vpop.f32.mrf.mxu0
        %1114 = vdwg.mxu0
        %v1116 = vsel %vm831, %v1065, 0
        %v1119 = vsel %vm1071, %v828, 0
        %1121 = vmatprep.subr.bf16.mxu0 0
        %1122 = vmatpush1.bf16.msra.mxu0 0
        %1123 = vmatprep.subr.bf16.mxu0 0
        %1124 = vmatpush1.bf16.msra.mxu0 0
        %1125 = vmatprep.subr.bf16.mxu0 0
        %1126 = vmatpush1.bf16.msra.mxu0 0
        %1127 = vmatprep.subr.bf16.mxu0 0
        %1128 = vmatpush1.bf16.msra.mxu0 0
        %1129 = vmatprep.subr.bf16.mxu0 0
        %1130 = vmatpush1.bf16.msra.mxu0 0
        %1131 = vmatprep.subr.bf16.mxu0 0
        %1132 = vmatpush1.bf16.msra.mxu0 0
        %1133 = vmatprep.subr.bf16.mxu0 0
        %1134 = vmatpush1.bf16.msra.mxu0 0
        %1135 = vmatprep.subr.bf16.mxu0 0
        %1136 = vmatpush1.bf16.msra.mxu0 %v1119
        %1137 = vmatprep.subr.bf16.mxu0 0
        %1138 = vmatpush2.bf16.msra.mxu0 0
        %1139 = vmatprep.subr.bf16.mxu0 0
        %1140 = vmatpush2.bf16.msra.mxu0 0
        %1141 = vmatprep.subr.bf16.mxu0 0
        %1142 = vmatpush2.bf16.msra.mxu0 0
        %1143 = vmatprep.subr.bf16.mxu0 0
        %1144 = vmatpush2.bf16.msra.mxu0 0
        %1145 = vmatprep.subr.bf16.mxu0 0
        %1146 = vmatpush2.bf16.msra.mxu0 0
        %1147 = vmatprep.subr.bf16.mxu0 0
        %1148 = vmatpush2.bf16.msra.mxu0 0
        %1149 = vmatprep.subr.bf16.mxu0 0
        %1150 = vmatpush2.bf16.msra.mxu0 0
        %1151 = vmatprep.subr.bf16.mxu0 0
        %1152 = vmatpush2.bf16.msra.mxu0 0
        %1153 = vmatprep.mubr.bf16.mxu0 0
        %1154 = vmatmul.mubr.bf16.gmra.mxu0 %v1116
        %v1155 = vpop.f32.mrf.mxu0
        %v1156 = vadd.f32 0.0, %v1155
        %v1157 = vpop.f32.mrf.mxu0
        %v1158 = vpop.f32.mrf.mxu0
        %v1159 = vpop.f32.mrf.mxu0
        %1160 = vdwg.mxu0
        %v1162 = vsel %vm831, %v1066, 0
        %v1165 = vsel %vm1071, %v829, 0
        %1167 = vmatprep.subr.bf16.mxu0 0
        %1168 = vmatpush1.bf16.msra.mxu0 0
        %1169 = vmatprep.subr.bf16.mxu0 0
        %1170 = vmatpush1.bf16.msra.mxu0 0
        %1171 = vmatprep.subr.bf16.mxu0 0
        %1172 = vmatpush1.bf16.msra.mxu0 0
        %1173 = vmatprep.subr.bf16.mxu0 0
        %1174 = vmatpush1.bf16.msra.mxu0 0
        %1175 = vmatprep.subr.bf16.mxu0 0
        %1176 = vmatpush1.bf16.msra.mxu0 0
        %1177 = vmatprep.subr.bf16.mxu0 0
        %1178 = vmatpush1.bf16.msra.mxu0 0
        %1179 = vmatprep.subr.bf16.mxu0 0
        %1180 = vmatpush1.bf16.msra.mxu0 0
        %1181 = vmatprep.subr.bf16.mxu0 0
        %1182 = vmatpush1.bf16.msra.mxu0 %v1165
        %1183 = vmatprep.subr.bf16.mxu0 0
        %1184 = vmatpush2.bf16.msra.mxu0 0
        %1185 = vmatprep.subr.bf16.mxu0 0
        %1186 = vmatpush2.bf16.msra.mxu0 0
        %1187 = vmatprep.subr.bf16.mxu0 0
        %1188 = vmatpush2.bf16.msra.mxu0 0
        %1189 = vmatprep.subr.bf16.mxu0 0
        %1190 = vmatpush2.bf16.msra.mxu0 0
        %1191 = vmatprep.subr.bf16.mxu0 0
        %1192 = vmatpush2.bf16.msra.mxu0 0
        %1193 = vmatprep.subr.bf16.mxu0 0
        %1194 = vmatpush2.bf16.msra.mxu0 0
        %1195 = vmatprep.subr.bf16.mxu0 0
        %1196 = vmatpush2.bf16.msra.mxu0 0
        %1197 = vmatprep.subr.bf16.mxu0 0
        %1198 = vmatpush2.bf16.msra.mxu0 0
        %1199 = vmatprep.mubr.bf16.mxu0 0
        %1200 = vmatmul.mubr.bf16.gmra.mxu0 %v1162
        %v1201 = vpop.f32.mrf.mxu0
        %v1202 = vadd.f32 0.0, %v1201
        %v1203 = vpop.f32.mrf.mxu0
        %v1204 = vpop.f32.mrf.mxu0
        %v1205 = vpop.f32.mrf.mxu0
        %1206 = vdwg.mxu0
        %v1208 = vsel %vm831, %v1067, 0
        %v1211 = vsel %vm1071, %v830, 0
        %1213 = vmatprep.subr.bf16.mxu0 0
        %1214 = vmatpush1.bf16.msra.mxu0 0
        %1215 = vmatprep.subr.bf16.mxu0 0
        %1216 = vmatpush1.bf16.msra.mxu0 0
        %1217 = vmatprep.subr.bf16.mxu0 0
        %1218 = vmatpush1.bf16.msra.mxu0 0
        %1219 = vmatprep.subr.bf16.mxu0 0
        %1220 = vmatpush1.bf16.msra.mxu0 0
        %1221 = vmatprep.subr.bf16.mxu0 0
        %1222 = vmatpush1.bf16.msra.mxu0 0
        %1223 = vmatprep.subr.bf16.mxu0 0
        %1224 = vmatpush1.bf16.msra.mxu0 0
        %1225 = vmatprep.subr.bf16.mxu0 0
        %1226 = vmatpush1.bf16.msra.mxu0 0
        %1227 = vmatprep.subr.bf16.mxu0 0
        %1228 = vmatpush1.bf16.msra.mxu0 %v1211
        %1229 = vmatprep.subr.bf16.mxu0 0
        %1230 = vmatpush2.bf16.msra.mxu0 0
        %1231 = vmatprep.subr.bf16.mxu0 0
        %1232 = vmatpush2.bf16.msra.mxu0 0
        %1233 = vmatprep.subr.bf16.mxu0 0
        %1234 = vmatpush2.bf16.msra.mxu0 0
        %1235 = vmatprep.subr.bf16.mxu0 0
        %1236 = vmatpush2.bf16.msra.mxu0 0
        %1237 = vmatprep.subr.bf16.mxu0 0
        %1238 = vmatpush2.bf16.msra.mxu0 0
        %1239 = vmatprep.subr.bf16.mxu0 0
        %1240 = vmatpush2.bf16.msra.mxu0 0
        %1241 = vmatprep.subr.bf16.mxu0 0
        %1242 = vmatpush2.bf16.msra.mxu0 0
        %1243 = vmatprep.subr.bf16.mxu0 0
        %1244 = vmatpush2.bf16.msra.mxu0 0
        %1245 = vmatprep.mubr.bf16.mxu0 0
        %1246 = vmatmul.mubr.bf16.gmra.mxu0 %v1208
        %v1247 = vpop.f32.mrf.mxu0
        %v1248 = vadd.f32 0.0, %v1247
        %v1249 = vpop.f32.mrf.mxu0
        %v1250 = vpop.f32.mrf.mxu0
        %v1251 = vpop.f32.mrf.mxu0
        %1252 = vdwg.mxu0
        %v1253 = vpack.c.bf16 %v1110, %v1110
        %v1254 = vpack.c.bf16 %v1156, %v1156
        %v1255 = vpack.c.bf16 %v1202, %v1202
        %v1256 = vpack.c.bf16 %v1248, %v1248
        %v1257 = vld [vmem:[#allocation7] sm:$0xf]
        %v1258 = vld [vmem:[#allocation7 + $0x4] sm:$0xf]
        %v1259 = vld [vmem:[#allocation7 + $0x8] sm:$0xf]
        %v1260 = vld [vmem:[#allocation7 + $0xc] sm:$0xf]
        %v1262 = vsel %vm831, %v1253, 0
        %v1265 = vsel %vm1071, %v1257, 0
        %1267 = vmatprep.subr.bf16.mxu0 0
        %1268 = vmatpush1.bf16.msra.mxu0 0
        %1269 = vmatprep.subr.bf16.mxu0 0
        %1270 = vmatpush1.bf16.msra.mxu0 0
        %1271 = vmatprep.subr.bf16.mxu0 0
        %1272 = vmatpush1.bf16.msra.mxu0 0
        %1273 = vmatprep.subr.bf16.mxu0 0
        %1274 = vmatpush1.bf16.msra.mxu0 0
        %1275 = vmatprep.subr.bf16.mxu0 0
        %1276 = vmatpush1.bf16.msra.mxu0 0
        %1277 = vmatprep.subr.bf16.mxu0 0
        %1278 = vmatpush1.bf16.msra.mxu0 0
        %1279 = vmatprep.subr.bf16.mxu0 0
        %1280 = vmatpush1.bf16.msra.mxu0 0
        %1281 = vmatprep.subr.bf16.mxu0 0
        %1282 = vmatpush1.bf16.msra.mxu0 %v1265
        %1283 = vmatprep.subr.bf16.mxu0 0
        %1284 = vmatpush2.bf16.msra.mxu0 0
        %1285 = vmatprep.subr.bf16.mxu0 0
        %1286 = vmatpush2.bf16.msra.mxu0 0
        %1287 = vmatprep.subr.bf16.mxu0 0
        %1288 = vmatpush2.bf16.msra.mxu0 0
        %1289 = vmatprep.subr.bf16.mxu0 0
        %1290 = vmatpush2.bf16.msra.mxu0 0
        %1291 = vmatprep.subr.bf16.mxu0 0
        %1292 = vmatpush2.bf16.msra.mxu0 0
        %1293 = vmatprep.subr.bf16.mxu0 0
        %1294 = vmatpush2.bf16.msra.mxu0 0
        %1295 = vmatprep.subr.bf16.mxu0 0
        %1296 = vmatpush2.bf16.msra.mxu0 0
        %1297 = vmatprep.subr.bf16.mxu0 0
        %1298 = vmatpush2.bf16.msra.mxu0 0
        %1299 = vmatprep.mubr.bf16.mxu0 0
        %1300 = vmatmul.mubr.bf16.gmra.mxu0 %v1262
        %v1301 = vpop.f32.mrf.mxu0
        %v1302 = vadd.f32 0.0, %v1301
        %v1303 = vpop.f32.mrf.mxu0
        %v1304 = vpop.f32.mrf.mxu0
        %v1305 = vpop.f32.mrf.mxu0
        %1306 = vdwg.mxu0
        %v1308 = vsel %vm831, %v1254, 0
        %v1311 = vsel %vm1071, %v1258, 0
        %1313 = vmatprep.subr.bf16.mxu0 0
        %1314 = vmatpush1.bf16.msra.mxu0 0
        %1315 = vmatprep.subr.bf16.mxu0 0
        %1316 = vmatpush1.bf16.msra.mxu0 0
        %1317 = vmatprep.subr.bf16.mxu0 0
        %1318 = vmatpush1.bf16.msra.mxu0 0
        %1319 = vmatprep.subr.bf16.mxu0 0
        %1320 = vmatpush1.bf16.msra.mxu0 0
        %1321 = vmatprep.subr.bf16.mxu0 0
        %1322 = vmatpush1.bf16.msra.mxu0 0
        %1323 = vmatprep.subr.bf16.mxu0 0
        %1324 = vmatpush1.bf16.msra.mxu0 0
        %1325 = vmatprep.subr.bf16.mxu0 0
        %1326 = vmatpush1.bf16.msra.mxu0 0
        %1327 = vmatprep.subr.bf16.mxu0 0
        %1328 = vmatpush1.bf16.msra.mxu0 %v1311
        %1329 = vmatprep.subr.bf16.mxu0 0
        %1330 = vmatpush2.bf16.msra.mxu0 0
        %1331 = vmatprep.subr.bf16.mxu0 0
        %1332 = vmatpush2.bf16.msra.mxu0 0
        %1333 = vmatprep.subr.bf16.mxu0 0
        %1334 = vmatpush2.bf16.msra.mxu0 0
        %1335 = vmatprep.subr.bf16.mxu0 0
        %1336 = vmatpush2.bf16.msra.mxu0 0
        %1337 = vmatprep.subr.bf16.mxu0 0
        %1338 = vmatpush2.bf16.msra.mxu0 0
        %1339 = vmatprep.subr.bf16.mxu0 0
        %1340 = vmatpush2.bf16.msra.mxu0 0
        %1341 = vmatprep.subr.bf16.mxu0 0
        %1342 = vmatpush2.bf16.msra.mxu0 0
        %1343 = vmatprep.subr.bf16.mxu0 0
        %1344 = vmatpush2.bf16.msra.mxu0 0
        %1345 = vmatprep.mubr.bf16.mxu0 0
        %1346 = vmatmul.mubr.bf16.gmra.mxu0 %v1308
        %v1347 = vpop.f32.mrf.mxu0
        %v1348 = vadd.f32 0.0, %v1347
        %v1349 = vpop.f32.mrf.mxu0
        %v1350 = vpop.f32.mrf.mxu0
        %v1351 = vpop.f32.mrf.mxu0
        %1352 = vdwg.mxu0
        %v1354 = vsel %vm831, %v1255, 0
        %v1357 = vsel %vm1071, %v1259, 0
        %1359 = vmatprep.subr.bf16.mxu0 0
        %1360 = vmatpush1.bf16.msra.mxu0 0
        %1361 = vmatprep.subr.bf16.mxu0 0
        %1362 = vmatpush1.bf16.msra.mxu0 0
        %1363 = vmatprep.subr.bf16.mxu0 0
        %1364 = vmatpush1.bf16.msra.mxu0 0
        %1365 = vmatprep.subr.bf16.mxu0 0
        %1366 = vmatpush1.bf16.msra.mxu0 0
        %1367 = vmatprep.subr.bf16.mxu0 0
        %1368 = vmatpush1.bf16.msra.mxu0 0
        %1369 = vmatprep.subr.bf16.mxu0 0
        %1370 = vmatpush1.bf16.msra.mxu0 0
        %1371 = vmatprep.subr.bf16.mxu0 0
        %1372 = vmatpush1.bf16.msra.mxu0 0
        %1373 = vmatprep.subr.bf16.mxu0 0
        %1374 = vmatpush1.bf16.msra.mxu0 %v1357
        %1375 = vmatprep.subr.bf16.mxu0 0
        %1376 = vmatpush2.bf16.msra.mxu0 0
        %1377 = vmatprep.subr.bf16.mxu0 0
        %1378 = vmatpush2.bf16.msra.mxu0 0
        %1379 = vmatprep.subr.bf16.mxu0 0
        %1380 = vmatpush2.bf16.msra.mxu0 0
        %1381 = vmatprep.subr.bf16.mxu0 0
        %1382 = vmatpush2.bf16.msra.mxu0 0
        %1383 = vmatprep.subr.bf16.mxu0 0
        %1384 = vmatpush2.bf16.msra.mxu0 0
        %1385 = vmatprep.subr.bf16.mxu0 0
        %1386 = vmatpush2.bf16.msra.mxu0 0
        %1387 = vmatprep.subr.bf16.mxu0 0
        %1388 = vmatpush2.bf16.msra.mxu0 0
        %1389 = vmatprep.subr.bf16.mxu0 0
        %1390 = vmatpush2.bf16.msra.mxu0 0
        %1391 = vmatprep.mubr.bf16.mxu0 0
        %1392 = vmatmul.mubr.bf16.gmra.mxu0 %v1354
        %v1393 = vpop.f32.mrf.mxu0
        %v1394 = vadd.f32 0.0, %v1393
        %v1395 = vpop.f32.mrf.mxu0
        %v1396 = vpop.f32.mrf.mxu0
        %v1397 = vpop.f32.mrf.mxu0
        %1398 = vdwg.mxu0
        %v1400 = vsel %vm831, %v1256, 0
        %v1403 = vsel %vm1071, %v1260, 0
        %1405 = vmatprep.subr.bf16.mxu0 0
        %1406 = vmatpush1.bf16.msra.mxu0 0
        %1407 = vmatprep.subr.bf16.mxu0 0
        %1408 = vmatpush1.bf16.msra.mxu0 0
        %1409 = vmatprep.subr.bf16.mxu0 0
        %1410 = vmatpush1.bf16.msra.mxu0 0
        %1411 = vmatprep.subr.bf16.mxu0 0
        %1412 = vmatpush1.bf16.msra.mxu0 0
        %1413 = vmatprep.subr.bf16.mxu0 0
        %1414 = vmatpush1.bf16.msra.mxu0 0
        %1415 = vmatprep.subr.bf16.mxu0 0
        %1416 = vmatpush1.bf16.msra.mxu0 0
        %1417 = vmatprep.subr.bf16.mxu0 0
        %1418 = vmatpush1.bf16.msra.mxu0 0
        %1419 = vmatprep.subr.bf16.mxu0 0
        %1420 = vmatpush1.bf16.msra.mxu0 %v1403
        %1421 = vmatprep.subr.bf16.mxu0 0
        %1422 = vmatpush2.bf16.msra.mxu0 0
        %1423 = vmatprep.subr.bf16.mxu0 0
        %1424 = vmatpush2.bf16.msra.mxu0 0
        %1425 = vmatprep.subr.bf16.mxu0 0
        %1426 = vmatpush2.bf16.msra.mxu0 0
        %1427 = vmatprep.subr.bf16.mxu0 0
        %1428 = vmatpush2.bf16.msra.mxu0 0
        %1429 = vmatprep.subr.bf16.mxu0 0
        %1430 = vmatpush2.bf16.msra.mxu0 0
        %1431 = vmatprep.subr.bf16.mxu0 0
        %1432 = vmatpush2.bf16.msra.mxu0 0
        %1433 = vmatprep.subr.bf16.mxu0 0
        %1434 = vmatpush2.bf16.msra.mxu0 0
        %1435 = vmatprep.subr.bf16.mxu0 0
        %1436 = vmatpush2.bf16.msra.mxu0 0
        %1437 = vmatprep.mubr.bf16.mxu0 0
        %1438 = vmatmul.mubr.bf16.gmra.mxu0 %v1400
        %v1439 = vpop.f32.mrf.mxu0
        %v1440 = vadd.f32 0.0, %v1439
        %v1441 = vpop.f32.mrf.mxu0
        %v1442 = vpop.f32.mrf.mxu0
        %v1443 = vpop.f32.mrf.mxu0
        %1444 = vdwg.mxu0
        %v1445 = vsel %vm295, %v1302, 0.0
        %v1446 = vsel %vm295, %v1348, 0.0
        %v1447 = vadd.f32 %v1445, %v1446
        %v1448 = vsel %vm295, %v1394, 0.0
        %v1449 = vadd.f32 %v1447, %v1448
        %v1450 = vsel %vm295, %v1440, 0.0
        %v1451 = vadd.f32 %v1449, %v1450
        %v1452 = vld [vmem:[%s3] sm:$0x1]
        %v1454 = vlaneseq
        %v1455 = vshrl.u32 %v1454, 7
        %v1456 = vsub.s32 0, %v1455
        %v1457 = vrot.slane %v1452, %v1456
        %v1459 = vadd.f32 %v1451, %v1457
        %v1460 = vadd.f32 %v1459, %v281
        %1461 = vst.msk [vmem:[%s272] sm:$0xff] %vm295, %v1460
        %s1462 = sand.u32 %s124, 1
        %s1463 = scalar_lea.sflag [#allocation4], %s1462
        %s1464 = sand.u32 %s124, 1
        %s1465 = smul.addr %s1464, 8
        %s1466 = scalar_lea.vmem [#allocation8], %s1465
        %s1467 = sand.u32 %s150, 1
        %s1468 = scalar_lea.sflag [#allocation10], %s1467
        %s1469 = sand.u32 %s150, 1
        %s1470 = smul.addr %s1469, 32
        %s1471 = scalar_lea.vmem [#allocation9], %s1470
        // Predicated region
        $region49: #{tpu_custom_call.1} parent=35 // pred_check
          %p1472 = pneg %p134
        $region50: #{tpu_custom_call.1} parent=35 // pred_check_branch
          %1474 = sbr.rel (%p1472) target = $region52
        $region51: #{tpu_custom_call.1} parent=35 // pred_region
          %s1476 = ssub.s32 128, 128
          %1477 = vsyncadd %s1463, %s1476
          %s1478 = smul.addr %s27, 128
          %s1479 = scalar_lea.hbm %s4, %s1478
          %s1481 = sshll.u32 %s1466, 4
          %s1482 = int_to_ptr.vmem [resolvable:$true] %s1481
          %1484 = dma.vmem_to_hbm [thread:$0]  %s1482, 128, %s1479, %s1463
        $region52: #{tpu_custom_call.1} parent=35 // pred_fallthru
          _
        // Predicated region
        $region53: #{tpu_custom_call.1} parent=35 // pred_check
          %p1485 = pneg %p160
        $region54: #{tpu_custom_call.1} parent=35 // pred_check_branch
          %1487 = sbr.rel (%p1485) target = $region56
        $region55: #{tpu_custom_call.1} parent=35 // pred_region
          %s1489 = ssub.s32 512, 512
          %1490 = vsyncadd %s1468, %s1489
          %s1491 = smul.addr %s27, 4
          %s1492 = smul.addr %s1491, 128
          %s1493 = scalar_lea.hbm %s5, %s1492
          %s1494 = sshll.u32 %s1471, 4
          %s1495 = int_to_ptr.vmem [resolvable:$true] %s1494
          %1500 = dma.vmem_to_hbm [thread:$0]  %s1495, 512, %s1493, %s1468, 128, 128, 8
        $region56: #{tpu_custom_call.1} parent=35 // pred_fallthru
          _
      $region36: #{tpu_custom_call.1} parent=5 // pred_fallthru
        _
      %p1501 = scmp.le.s32.totalorder 2, %s22
      // Predicated region
      $region57: #{tpu_custom_call.1} parent=5 // pred_check
        %p1502 = pneg %p1501
      $region58: #{tpu_custom_call.1} parent=5 // pred_check_branch
        %1504 = sbr.rel (%p1502) target = $region60
      $region59: #{tpu_custom_call.1} parent=5 // pred_region
        %s1505 = ssub.s32 %s22, 2
        // Predicated region
        $region61: #{tpu_custom_call.1} parent=59 // pred_check
          %p1506 = pneg %p140
        $region62: #{tpu_custom_call.1} parent=59 // pred_check_branch
          %1508 = sbr.rel (%p1506) target = $region64
        $region63: #{tpu_custom_call.1} parent=59 // pred_region
          %s1509 = sand.u32 %s125, 1
          %s1510 = scalar_lea.sflag [#allocation4], %s1509
          %s1511 = sand.u32 %s125, 1
          %s1512 = smul.addr %s1511, 8
          %s1513 = scalar_lea.vmem [#allocation8], %s1512
          %1514 = dma.done %s1510, 128
        $region64: #{tpu_custom_call.1} parent=59 // pred_fallthru
          _
        // Predicated region
        $region65: #{tpu_custom_call.1} parent=59 // pred_check
          %p1515 = pneg %p166
        $region66: #{tpu_custom_call.1} parent=59 // pred_check_branch
          %1517 = sbr.rel (%p1515) target = $region68
        $region67: #{tpu_custom_call.1} parent=59 // pred_region
          %s1518 = sand.u32 %s151, 1
          %s1519 = scalar_lea.sflag [#allocation10], %s1518
          %s1520 = sand.u32 %s151, 1
          %s1521 = smul.addr %s1520, 32
          %s1522 = scalar_lea.vmem [#allocation9], %s1521
          %1523 = dma.done %s1519, 512
        $region68: #{tpu_custom_call.1} parent=59 // pred_fallthru
          _
      $region60: #{tpu_custom_call.1} parent=5 // pred_fallthru
        _
    $region6: #{tpu_custom_call.1} parent=1 // loop_footer
      %s26 = sadd.s32 1, %s22
    $region7: #{tpu_custom_call.1} parent=1 // loop_footer_branch
      %21 = sbr.rel target = $region3
    $region8: #{tpu_custom_call.1} parent=1 // loop_exit
      _
    %1524 = vsyncpa [#allocation3], 1
    %s1525 = scalar_lea.sflag [#allocation3], 1
    %1526 = vsyncpa %s1525, 1
    %1527 = vsyncpa [#allocation6], 1
    %1528 = vsyncpa [#allocation4], 1
    %s1529 = scalar_lea.sflag [#allocation4], 1
    %1530 = vsyncpa %s1529, 1
    %1531 = vsyncpa [#allocation10], 1
    %s1532 = scalar_lea.sflag [#allocation10], 1
    %1533 = vsyncpa %s1532, 1

</llo_original>
